<compile_context>
chip_gen: v7x
topology: tpu7x:2x2x1
jax: 0.10.0
libtpu: 0.0.40
codegen_flags: <defaults>
</compile_context>

<pallas_src>
import jax
import jax.numpy as jnp
from jax.experimental import pallas as pl
from jax.experimental.pallas import tpu as pltpu


def simple_model_kernel(ids_ref, emb_tbl_ref, w_ih_ref, w_hh_ref, b_ref,
                        fc1_w_ref, fc1_b_ref, fc2_w_ref, fc2_b_ref, out_ref):
    """Fused embedding gather -> single-layer LSTM -> fc1 -> fc2.

    ids_ref     : (B*T, 1) int32  token ids (b-major, then t)
    emb_tbl_ref : (V+1, E) f32    embedding table (padding row zeroed)
    w_ih_ref    : (E, 4H)  f32    torch weight_ih_l0 transposed
    w_hh_ref    : (H, 4H)  f32    torch weight_hh_l0 transposed
    b_ref       : (1, 4H)  f32    bias_ih_l0 + bias_hh_l0
    fc1_w_ref   : (T*H, T) f32    fc1.weight transposed
    fc1_b_ref   : (1, T)   f32
    fc2_w_ref   : (T, 2)   f32    fc2.weight transposed
    fc2_b_ref   : (1, 2)   f32
    out_ref     : (B, 2)   f32
    """
    BT = ids_ref.shape[0]
    V1, E = emb_tbl_ref.shape
    H, G = w_hh_ref.shape            # G = 4*H
    T = fc1_w_ref.shape[1]           # sentence_length (multiplier == 1)
    B = BT // T

    # ---- fused embedding lookup (exact one-hot matmul) + input projection ----
    # One (B*T, V+1) x (V+1, E) matmul replaces the external XLA gather, and one
    # (B*T, E) x (E, 4H) matmul replaces T tiny per-step input projections,
    # taking them off the serial recurrence path.
    ids = ids_ref[...]                                               # (B*T, 1)
    onehot = jnp.where(
        ids == jax.lax.broadcasted_iota(jnp.int32, (BT, V1), 1),
        1.0, 0.0).astype(jnp.float32)                                # (B*T, V+1)
    x = jnp.dot(onehot, emb_tbl_ref[...],
                preferred_element_type=jnp.float32,
                precision=jax.lax.Precision.HIGHEST)                 # exact gather
    gates_x = (jnp.dot(x, w_ih_ref[...], preferred_element_type=jnp.float32)
               + b_ref[...])                                         # (B*T, 4H)
    gates_x = gates_x.reshape(B, T, G)                               # layout-free

    # ---- invariant loads hoisted out of the unrolled time loop ----------------
    w_hh = w_hh_ref[...]                                             # (H, 4H)
    # Static lane mask: gate g (tanh) occupies lanes [2H, 3H); i/f/o use sigmoid.
    lane = jax.lax.broadcasted_iota(jnp.int32, (B, G), 1)
    g_lane = (lane >= 2 * H) & (lane < 3 * H)

    h = jnp.zeros((B, H), jnp.float32)
    c = jnp.zeros((B, H), jnp.float32)
    # fc1 fused into the recurrence: running (B, T) accumulator instead of
    # keeping T hidden states live and concatenating.
    y1 = jnp.broadcast_to(fc1_b_ref[...], (B, T))

    # T is small and static -> unroll in Python (LLO scheduling visibility).
    for t in range(T):
        # Only this (B,H)x(H,4H) matmul remains on the serial h/c path.
        gates = gates_x[:, t, :] + jnp.dot(
            h, w_hh, preferred_element_type=jnp.float32)             # (B, 4H)
        # Nonlinearity on the full 128-lane tile, slice afterwards (i, f, g, o).
        act = jnp.where(g_lane, jnp.tanh(gates), jax.nn.sigmoid(gates))
        i = act[:, 0 * H:1 * H]
        f = act[:, 1 * H:2 * H]
        g = act[:, 2 * H:3 * H]
        o = act[:, 3 * H:4 * H]
        c = f * c + i * g
        h = o * jnp.tanh(c)
        # fc1 contribution of h_t (off the critical path; overlaps next step).
        y1 = y1 + jnp.dot(h, fc1_w_ref[t * H:(t + 1) * H, :],
                          preferred_element_type=jnp.float32)        # (B, T)

    # TODO(synk): nn.Dropout (training mode) not applied; eval-mode identity.
    out = (jnp.dot(y1, fc2_w_ref[...], preferred_element_type=jnp.float32)
           + fc2_b_ref[...])                                         # (B, 2)
    out_ref[...] = out.astype(out_ref.dtype)


def simple_model_forward(token_ids, params):
    """token_ids: (B, T) int32 in [0, vocab_size] (index vocab_size == padding row)."""
    B, T = token_ids.shape
    # Layout plumbing only: present ids as a (B*T, 1) column for the in-kernel
    # one-hot compare (no (B,T,E) embedding tensor is ever materialized in HBM).
    ids2 = token_ids.reshape(B * T, 1).astype(jnp.int32)

    out = pl.pallas_call(
        simple_model_kernel,
        # Gridless call: whole (tiny) arrays live in VMEM via default BlockSpecs.
        out_shape=jax.ShapeDtypeStruct((B, 2), jnp.float32),
    )(
        ids2,
        params["embedding"],
        params["w_ih_T"], params["w_hh_T"], params["b_lstm"],
        params["fc1_w_T"], params["fc1_b"],
        params["fc2_w_T"], params["fc2_b"],
    )
    return out


def init_params(key, vocab_size, sentence_length, embed_dim, hidden_dim):
    ks = jax.random.split(key, 8)
    scale = 0.1
    T, E, H = sentence_length, embed_dim, hidden_dim

    embedding = scale * jax.random.normal(ks[0], (vocab_size + 1, E), jnp.float32)
    # nn.Embedding(padding_idx=-1) -> last row is zeros.
    embedding = embedding.at[-1].set(0.0)

    w_ih = scale * jax.random.normal(ks[1], (4 * H, E), jnp.float32)   # torch layout
    w_hh = scale * jax.random.normal(ks[2], (4 * H, H), jnp.float32)
    b_ih = scale * jax.random.normal(ks[3], (4 * H,), jnp.float32)
    b_hh = scale * jax.random.normal(ks[4], (4 * H,), jnp.float32)

    fc1_w = scale * jax.random.normal(ks[5], (T, H * T), jnp.float32)  # (out, in)
    fc1_b = scale * jax.random.normal(ks[6], (T,), jnp.float32)
    fc2_w = scale * jax.random.normal(ks[7], (2, T), jnp.float32)
    fc2_b = jnp.zeros((2,), jnp.float32)

    return {
        "embedding": embedding,
        "w_ih_T": w_ih.T,                                # (E, 4H)
        "w_hh_T": w_hh.T,                                # (H, 4H)
        "b_lstm": (b_ih + b_hh).reshape(1, 4 * H),       # (1, 4H)
        "fc1_w_T": fc1_w.T,                              # (T*H, T)
        "fc1_b": fc1_b.reshape(1, T),
        "fc2_w_T": fc2_w.T,                              # (T, 2)
        "fc2_b": fc2_b.reshape(1, 2),
    }


if __name__ == "__main__":
    # Small config consistent with the module's forward pass.
    vocab_size = 50
    sentence_length = 8       # T
    embed_dim = 16            # E
    hidden_dim = 32           # H  (4H = 128 -> one full lane width per gate tile)
    batch = 2                 # B

    key = jax.random.PRNGKey(0)
    pkey, xkey = jax.random.split(key)
    params = init_params(pkey, vocab_size, sentence_length, embed_dim, hidden_dim)

    token_ids = jax.random.randint(
        xkey, (batch, sentence_length), 0, vocab_size + 1, dtype=jnp.int32)

    fwd = jax.jit(simple_model_forward)
    out = fwd(token_ids, params)
    jax.block_until_ready(out)
    assert out.shape == (batch, 2) and out.dtype == jnp.float32
    print("KERNEL_OK")
</pallas_src>

<mosaic_0001>
module attributes {stable_mosaic.version = 11 : i64} {
  func.func @simple_model_kernel(%arg0: memref<16x1xi32, #tpu.memory_space<vmem>>, %arg1: memref<51x16xf32, #tpu.memory_space<vmem>>, %arg2: memref<16x128xf32, #tpu.memory_space<vmem>>, %arg3: memref<32x128xf32, #tpu.memory_space<vmem>>, %arg4: memref<1x128xf32, #tpu.memory_space<vmem>>, %arg5: memref<256x8xf32, #tpu.memory_space<vmem>>, %arg6: memref<1x8xf32, #tpu.memory_space<vmem>>, %arg7: memref<8x2xf32, #tpu.memory_space<vmem>>, %arg8: memref<1x2xf32, #tpu.memory_space<vmem>>, %arg9: memref<2x2xf32, #tpu.memory_space<vmem>>) attributes {dimension_semantics = [], scalar_prefetch = 0 : i64, scratch_operands = 0 : i64, tpu.core_type = #tpu.core_type<tc>} {
    %c0 = arith.constant 0 : index
    %c0_0 = arith.constant 0 : index
    %0 = vector.load %arg0[%c0, %c0_0] : memref<16x1xi32, #tpu.memory_space<vmem>>, vector<16x1xi32>
    %1 = tpu.iota {dimensions = array<i32: 1>} : vector<16x51xi32>
    %2 = vector.broadcast %0 : vector<16x1xi32> to vector<16x51xi32>
    %3 = arith.cmpi eq, %2, %1 : vector<16x51xi32>
    %cst = arith.constant 1.000000e+00 : f32
    %cst_1 = arith.constant 0.000000e+00 : f32
    %4 = vector.broadcast %cst : f32 to vector<16x51xf32>
    %5 = vector.broadcast %cst_1 : f32 to vector<16x51xf32>
    %6 = arith.select %3, %4, %5 : vector<16x51xi1>, vector<16x51xf32>
    %c0_2 = arith.constant 0 : index
    %c0_3 = arith.constant 0 : index
    %7 = vector.load %arg1[%c0_2, %c0_3] : memref<51x16xf32, #tpu.memory_space<vmem>>, vector<51x16xf32>
    %cst_4 = arith.constant dense<0.000000e+00> : vector<16x16xf32>
    %8 = tpu.matmul %6, %7, %cst_4 {dimension_numbers = #tpu.dot_dimension_numbers<[1], [0], [0], [1], [0, 0, 1, 1], [], []>, precision = #tpu.contract_precision<fp32>} : vector<16x51xf32>, vector<51x16xf32>, vector<16x16xf32> -> vector<16x16xf32>
    %c0_5 = arith.constant 0 : index
    %c0_6 = arith.constant 0 : index
    %9 = vector.load %arg2[%c0_5, %c0_6] : memref<16x128xf32, #tpu.memory_space<vmem>>, vector<16x128xf32>
    %cst_7 = arith.constant dense<0.000000e+00> : vector<16x128xf32>
    %10 = tpu.matmul %8, %9, %cst_7 {dimension_numbers = #tpu.dot_dimension_numbers<[1], [0], [0], [1], [0, 0, 1, 1], [], []>} : vector<16x16xf32>, vector<16x128xf32>, vector<16x128xf32> -> vector<16x128xf32>
    %c0_8 = arith.constant 0 : index
    %c0_9 = arith.constant 0 : index
    %11 = vector.load %arg4[%c0_8, %c0_9] : memref<1x128xf32, #tpu.memory_space<vmem>>, vector<1x128xf32>
    %12 = vector.broadcast %11 : vector<1x128xf32> to vector<16x128xf32>
    %13 = arith.addf %10, %12 : vector<16x128xf32>
    %14 = vector.shape_cast %13 : vector<16x128xf32> to vector<2x8x128xf32>
    %c0_10 = arith.constant 0 : index
    %c0_11 = arith.constant 0 : index
    %15 = vector.load %arg3[%c0_10, %c0_11] : memref<32x128xf32, #tpu.memory_space<vmem>>, vector<32x128xf32>
    %16 = tpu.iota {dimensions = array<i32: 1>} : vector<2x128xi32>
    %c64_i32 = arith.constant 64 : i32
    %17 = vector.broadcast %c64_i32 : i32 to vector<2x128xi32>
    %18 = arith.cmpi sge, %16, %17 : vector<2x128xi32>
    %c96_i32 = arith.constant 96 : i32
    %19 = vector.broadcast %c96_i32 : i32 to vector<2x128xi32>
    %20 = arith.cmpi slt, %16, %19 : vector<2x128xi32>
    %21 = arith.andi %18, %20 : vector<2x128xi1>
    %cst_12 = arith.constant 0.000000e+00 : f32
    %22 = vector.broadcast %cst_12 : f32 to vector<2x32xf32>
    %cst_13 = arith.constant 0.000000e+00 : f32
    %23 = vector.broadcast %cst_13 : f32 to vector<2x32xf32>
    %c0_14 = arith.constant 0 : index
    %c0_15 = arith.constant 0 : index
    %24 = vector.load %arg6[%c0_14, %c0_15] : memref<1x8xf32, #tpu.memory_space<vmem>>, vector<1x8xf32>
    %25 = vector.shape_cast %24 : vector<1x8xf32> to vector<1x8xf32>
    %26 = vector.broadcast %25 : vector<1x8xf32> to vector<2x8xf32>
    %27 = vector.extract_strided_slice %14 {offsets = [0, 0, 0], sizes = [2, 1, 128], strides = [1, 1, 1]} : vector<2x8x128xf32> to vector<2x1x128xf32>
    %28 = vector.shape_cast %27 : vector<2x1x128xf32> to vector<2x128xf32>
    %cst_16 = arith.constant dense<0.000000e+00> : vector<2x128xf32>
    %29 = tpu.matmul %22, %15, %cst_16 {dimension_numbers = #tpu.dot_dimension_numbers<[1], [0], [0], [1], [0, 0, 1, 1], [], []>} : vector<2x32xf32>, vector<32x128xf32>, vector<2x128xf32> -> vector<2x128xf32>
    %30 = arith.addf %28, %29 : vector<2x128xf32>
    %31 = math.tanh %30 : vector<2x128xf32>
    %32 = arith.negf %30 : vector<2x128xf32>
    %33 = math.exp %32 : vector<2x128xf32>
    %cst_17 = arith.constant 1.000000e+00 : f32
    %34 = vector.broadcast %cst_17 : f32 to vector<2x128xf32>
    %35 = arith.addf %34, %33 : vector<2x128xf32>
    %36 = arith.divf %34, %35 : vector<2x128xf32>
    %37 = arith.select %21, %31, %36 : vector<2x128xi1>, vector<2x128xf32>
    %38 = vector.extract_strided_slice %37 {offsets = [0, 0], sizes = [2, 32], strides = [1, 1]} : vector<2x128xf32> to vector<2x32xf32>
    %39 = vector.extract_strided_slice %37 {offsets = [0, 32], sizes = [2, 32], strides = [1, 1]} : vector<2x128xf32> to vector<2x32xf32>
    %40 = vector.extract_strided_slice %37 {offsets = [0, 64], sizes = [2, 32], strides = [1, 1]} : vector<2x128xf32> to vector<2x32xf32>
    %41 = vector.extract_strided_slice %37 {offsets = [0, 96], sizes = [2, 32], strides = [1, 1]} : vector<2x128xf32> to vector<2x32xf32>
    %42 = arith.mulf %39, %23 : vector<2x32xf32>
    %43 = arith.mulf %38, %40 : vector<2x32xf32>
    %44 = arith.addf %42, %43 : vector<2x32xf32>
    %45 = math.tanh %44 : vector<2x32xf32>
    %46 = arith.mulf %41, %45 : vector<2x32xf32>
    %c0_18 = arith.constant 0 : index
    %c0_19 = arith.constant 0 : index
    %47 = vector.load %arg5[%c0_18, %c0_19] : memref<256x8xf32, #tpu.memory_space<vmem>>, vector<32x8xf32>
    %cst_20 = arith.constant dense<0.000000e+00> : vector<2x8xf32>
    %48 = tpu.matmul %46, %47, %cst_20 {dimension_numbers = #tpu.dot_dimension_numbers<[1], [0], [0], [1], [0, 0, 1, 1], [], []>} : vector<2x32xf32>, vector<32x8xf32>, vector<2x8xf32> -> vector<2x8xf32>
    %49 = arith.addf %26, %48 : vector<2x8xf32>
    %50 = vector.extract_strided_slice %14 {offsets = [0, 1, 0], sizes = [2, 1, 128], strides = [1, 1, 1]} : vector<2x8x128xf32> to vector<2x1x128xf32>
    %51 = vector.shape_cast %50 : vector<2x1x128xf32> to vector<2x128xf32>
    %cst_21 = arith.constant dense<0.000000e+00> : vector<2x128xf32>
    %52 = tpu.matmul %46, %15, %cst_21 {dimension_numbers = #tpu.dot_dimension_numbers<[1], [0], [0], [1], [0, 0, 1, 1], [], []>} : vector<2x32xf32>, vector<32x128xf32>, vector<2x128xf32> -> vector<2x128xf32>
    %53 = arith.addf %51, %52 : vector<2x128xf32>
    %54 = math.tanh %53 : vector<2x128xf32>
    %55 = arith.negf %53 : vector<2x128xf32>
    %56 = math.exp %55 : vector<2x128xf32>
    %cst_22 = arith.constant 1.000000e+00 : f32
    %57 = vector.broadcast %cst_22 : f32 to vector<2x128xf32>
    %58 = arith.addf %57, %56 : vector<2x128xf32>
    %59 = arith.divf %57, %58 : vector<2x128xf32>
    %60 = arith.select %21, %54, %59 : vector<2x128xi1>, vector<2x128xf32>
    %61 = vector.extract_strided_slice %60 {offsets = [0, 0], sizes = [2, 32], strides = [1, 1]} : vector<2x128xf32> to vector<2x32xf32>
    %62 = vector.extract_strided_slice %60 {offsets = [0, 32], sizes = [2, 32], strides = [1, 1]} : vector<2x128xf32> to vector<2x32xf32>
    %63 = vector.extract_strided_slice %60 {offsets = [0, 64], sizes = [2, 32], strides = [1, 1]} : vector<2x128xf32> to vector<2x32xf32>
    %64 = vector.extract_strided_slice %60 {offsets = [0, 96], sizes = [2, 32], strides = [1, 1]} : vector<2x128xf32> to vector<2x32xf32>
    %65 = arith.mulf %62, %44 : vector<2x32xf32>
    %66 = arith.mulf %61, %63 : vector<2x32xf32>
    %67 = arith.addf %65, %66 : vector<2x32xf32>
    %68 = math.tanh %67 : vector<2x32xf32>
    %69 = arith.mulf %64, %68 : vector<2x32xf32>
    %c32 = arith.constant 32 : index
    %c0_23 = arith.constant 0 : index
    %70 = vector.load %arg5[%c32, %c0_23] : memref<256x8xf32, #tpu.memory_space<vmem>>, vector<32x8xf32>
    %cst_24 = arith.constant dense<0.000000e+00> : vector<2x8xf32>
    %71 = tpu.matmul %69, %70, %cst_24 {dimension_numbers = #tpu.dot_dimension_numbers<[1], [0], [0], [1], [0, 0, 1, 1], [], []>} : vector<2x32xf32>, vector<32x8xf32>, vector<2x8xf32> -> vector<2x8xf32>
    %72 = arith.addf %49, %71 : vector<2x8xf32>
    %73 = vector.extract_strided_slice %14 {offsets = [0, 2, 0], sizes = [2, 1, 128], strides = [1, 1, 1]} : vector<2x8x128xf32> to vector<2x1x128xf32>
    %74 = vector.shape_cast %73 : vector<2x1x128xf32> to vector<2x128xf32>
    %cst_25 = arith.constant dense<0.000000e+00> : vector<2x128xf32>
    %75 = tpu.matmul %69, %15, %cst_25 {dimension_numbers = #tpu.dot_dimension_numbers<[1], [0], [0], [1], [0, 0, 1, 1], [], []>} : vector<2x32xf32>, vector<32x128xf32>, vector<2x128xf32> -> vector<2x128xf32>
    %76 = arith.addf %74, %75 : vector<2x128xf32>
    %77 = math.tanh %76 : vector<2x128xf32>
    %78 = arith.negf %76 : vector<2x128xf32>
    %79 = math.exp %78 : vector<2x128xf32>
    %cst_26 = arith.constant 1.000000e+00 : f32
    %80 = vector.broadcast %cst_26 : f32 to vector<2x128xf32>
    %81 = arith.addf %80, %79 : vector<2x128xf32>
    %82 = arith.divf %80, %81 : vector<2x128xf32>
    %83 = arith.select %21, %77, %82 : vector<2x128xi1>, vector<2x128xf32>
    %84 = vector.extract_strided_slice %83 {offsets = [0, 0], sizes = [2, 32], strides = [1, 1]} : vector<2x128xf32> to vector<2x32xf32>
    %85 = vector.extract_strided_slice %83 {offsets = [0, 32], sizes = [2, 32], strides = [1, 1]} : vector<2x128xf32> to vector<2x32xf32>
    %86 = vector.extract_strided_slice %83 {offsets = [0, 64], sizes = [2, 32], strides = [1, 1]} : vector<2x128xf32> to vector<2x32xf32>
    %87 = vector.extract_strided_slice %83 {offsets = [0, 96], sizes = [2, 32], strides = [1, 1]} : vector<2x128xf32> to vector<2x32xf32>
    %88 = arith.mulf %85, %67 : vector<2x32xf32>
    %89 = arith.mulf %84, %86 : vector<2x32xf32>
    %90 = arith.addf %88, %89 : vector<2x32xf32>
    %91 = math.tanh %90 : vector<2x32xf32>
    %92 = arith.mulf %87, %91 : vector<2x32xf32>
    %c64 = arith.constant 64 : index
    %c0_27 = arith.constant 0 : index
    %93 = vector.load %arg5[%c64, %c0_27] : memref<256x8xf32, #tpu.memory_space<vmem>>, vector<32x8xf32>
    %cst_28 = arith.constant dense<0.000000e+00> : vector<2x8xf32>
    %94 = tpu.matmul %92, %93, %cst_28 {dimension_numbers = #tpu.dot_dimension_numbers<[1], [0], [0], [1], [0, 0, 1, 1], [], []>} : vector<2x32xf32>, vector<32x8xf32>, vector<2x8xf32> -> vector<2x8xf32>
    %95 = arith.addf %72, %94 : vector<2x8xf32>
    %96 = vector.extract_strided_slice %14 {offsets = [0, 3, 0], sizes = [2, 1, 128], strides = [1, 1, 1]} : vector<2x8x128xf32> to vector<2x1x128xf32>
    %97 = vector.shape_cast %96 : vector<2x1x128xf32> to vector<2x128xf32>
    %cst_29 = arith.constant dense<0.000000e+00> : vector<2x128xf32>
    %98 = tpu.matmul %92, %15, %cst_29 {dimension_numbers = #tpu.dot_dimension_numbers<[1], [0], [0], [1], [0, 0, 1, 1], [], []>} : vector<2x32xf32>, vector<32x128xf32>, vector<2x128xf32> -> vector<2x128xf32>
    %99 = arith.addf %97, %98 : vector<2x128xf32>
    %100 = math.tanh %99 : vector<2x128xf32>
    %101 = arith.negf %99 : vector<2x128xf32>
    %102 = math.exp %101 : vector<2x128xf32>
    %cst_30 = arith.constant 1.000000e+00 : f32
    %103 = vector.broadcast %cst_30 : f32 to vector<2x128xf32>
    %104 = arith.addf %103, %102 : vector<2x128xf32>
    %105 = arith.divf %103, %104 : vector<2x128xf32>
    %106 = arith.select %21, %100, %105 : vector<2x128xi1>, vector<2x128xf32>
    %107 = vector.extract_strided_slice %106 {offsets = [0, 0], sizes = [2, 32], strides = [1, 1]} : vector<2x128xf32> to vector<2x32xf32>
    %108 = vector.extract_strided_slice %106 {offsets = [0, 32], sizes = [2, 32], strides = [1, 1]} : vector<2x128xf32> to vector<2x32xf32>
    %109 = vector.extract_strided_slice %106 {offsets = [0, 64], sizes = [2, 32], strides = [1, 1]} : vector<2x128xf32> to vector<2x32xf32>
    %110 = vector.extract_strided_slice %106 {offsets = [0, 96], sizes = [2, 32], strides = [1, 1]} : vector<2x128xf32> to vector<2x32xf32>
    %111 = arith.mulf %108, %90 : vector<2x32xf32>
    %112 = arith.mulf %107, %109 : vector<2x32xf32>
    %113 = arith.addf %111, %112 : vector<2x32xf32>
    %114 = math.tanh %113 : vector<2x32xf32>
    %115 = arith.mulf %110, %114 : vector<2x32xf32>
    %c96 = arith.constant 96 : index
    %c0_31 = arith.constant 0 : index
    %116 = vector.load %arg5[%c96, %c0_31] : memref<256x8xf32, #tpu.memory_space<vmem>>, vector<32x8xf32>
    %cst_32 = arith.constant dense<0.000000e+00> : vector<2x8xf32>
    %117 = tpu.matmul %115, %116, %cst_32 {dimension_numbers = #tpu.dot_dimension_numbers<[1], [0], [0], [1], [0, 0, 1, 1], [], []>} : vector<2x32xf32>, vector<32x8xf32>, vector<2x8xf32> -> vector<2x8xf32>
    %118 = arith.addf %95, %117 : vector<2x8xf32>
    %119 = vector.extract_strided_slice %14 {offsets = [0, 4, 0], sizes = [2, 1, 128], strides = [1, 1, 1]} : vector<2x8x128xf32> to vector<2x1x128xf32>
    %120 = vector.shape_cast %119 : vector<2x1x128xf32> to vector<2x128xf32>
    %cst_33 = arith.constant dense<0.000000e+00> : vector<2x128xf32>
    %121 = tpu.matmul %115, %15, %cst_33 {dimension_numbers = #tpu.dot_dimension_numbers<[1], [0], [0], [1], [0, 0, 1, 1], [], []>} : vector<2x32xf32>, vector<32x128xf32>, vector<2x128xf32> -> vector<2x128xf32>
    %122 = arith.addf %120, %121 : vector<2x128xf32>
    %123 = math.tanh %122 : vector<2x128xf32>
    %124 = arith.negf %122 : vector<2x128xf32>
    %125 = math.exp %124 : vector<2x128xf32>
    %cst_34 = arith.constant 1.000000e+00 : f32
    %126 = vector.broadcast %cst_34 : f32 to vector<2x128xf32>
    %127 = arith.addf %126, %125 : vector<2x128xf32>
    %128 = arith.divf %126, %127 : vector<2x128xf32>
    %129 = arith.select %21, %123, %128 : vector<2x128xi1>, vector<2x128xf32>
    %130 = vector.extract_strided_slice %129 {offsets = [0, 0], sizes = [2, 32], strides = [1, 1]} : vector<2x128xf32> to vector<2x32xf32>
    %131 = vector.extract_strided_slice %129 {offsets = [0, 32], sizes = [2, 32], strides = [1, 1]} : vector<2x128xf32> to vector<2x32xf32>
    %132 = vector.extract_strided_slice %129 {offsets = [0, 64], sizes = [2, 32], strides = [1, 1]} : vector<2x128xf32> to vector<2x32xf32>
    %133 = vector.extract_strided_slice %129 {offsets = [0, 96], sizes = [2, 32], strides = [1, 1]} : vector<2x128xf32> to vector<2x32xf32>
    %134 = arith.mulf %131, %113 : vector<2x32xf32>
    %135 = arith.mulf %130, %132 : vector<2x32xf32>
    %136 = arith.addf %134, %135 : vector<2x32xf32>
    %137 = math.tanh %136 : vector<2x32xf32>
    %138 = arith.mulf %133, %137 : vector<2x32xf32>
    %c128 = arith.constant 128 : index
    %c0_35 = arith.constant 0 : index
    %139 = vector.load %arg5[%c128, %c0_35] : memref<256x8xf32, #tpu.memory_space<vmem>>, vector<32x8xf32>
    %cst_36 = arith.constant dense<0.000000e+00> : vector<2x8xf32>
    %140 = tpu.matmul %138, %139, %cst_36 {dimension_numbers = #tpu.dot_dimension_numbers<[1], [0], [0], [1], [0, 0, 1, 1], [], []>} : vector<2x32xf32>, vector<32x8xf32>, vector<2x8xf32> -> vector<2x8xf32>
    %141 = arith.addf %118, %140 : vector<2x8xf32>
    %142 = vector.extract_strided_slice %14 {offsets = [0, 5, 0], sizes = [2, 1, 128], strides = [1, 1, 1]} : vector<2x8x128xf32> to vector<2x1x128xf32>
    %143 = vector.shape_cast %142 : vector<2x1x128xf32> to vector<2x128xf32>
    %cst_37 = arith.constant dense<0.000000e+00> : vector<2x128xf32>
    %144 = tpu.matmul %138, %15, %cst_37 {dimension_numbers = #tpu.dot_dimension_numbers<[1], [0], [0], [1], [0, 0, 1, 1], [], []>} : vector<2x32xf32>, vector<32x128xf32>, vector<2x128xf32> -> vector<2x128xf32>
    %145 = arith.addf %143, %144 : vector<2x128xf32>
    %146 = math.tanh %145 : vector<2x128xf32>
    %147 = arith.negf %145 : vector<2x128xf32>
    %148 = math.exp %147 : vector<2x128xf32>
    %cst_38 = arith.constant 1.000000e+00 : f32
    %149 = vector.broadcast %cst_38 : f32 to vector<2x128xf32>
    %150 = arith.addf %149, %148 : vector<2x128xf32>
    %151 = arith.divf %149, %150 : vector<2x128xf32>
    %152 = arith.select %21, %146, %151 : vector<2x128xi1>, vector<2x128xf32>
    %153 = vector.extract_strided_slice %152 {offsets = [0, 0], sizes = [2, 32], strides = [1, 1]} : vector<2x128xf32> to vector<2x32xf32>
    %154 = vector.extract_strided_slice %152 {offsets = [0, 32], sizes = [2, 32], strides = [1, 1]} : vector<2x128xf32> to vector<2x32xf32>
    %155 = vector.extract_strided_slice %152 {offsets = [0, 64], sizes = [2, 32], strides = [1, 1]} : vector<2x128xf32> to vector<2x32xf32>
    %156 = vector.extract_strided_slice %152 {offsets = [0, 96], sizes = [2, 32], strides = [1, 1]} : vector<2x128xf32> to vector<2x32xf32>
    %157 = arith.mulf %154, %136 : vector<2x32xf32>
    %158 = arith.mulf %153, %155 : vector<2x32xf32>
    %159 = arith.addf %157, %158 : vector<2x32xf32>
    %160 = math.tanh %159 : vector<2x32xf32>
    %161 = arith.mulf %156, %160 : vector<2x32xf32>
    %c160 = arith.constant 160 : index
    %c0_39 = arith.constant 0 : index
    %162 = vector.load %arg5[%c160, %c0_39] : memref<256x8xf32, #tpu.memory_space<vmem>>, vector<32x8xf32>
    %cst_40 = arith.constant dense<0.000000e+00> : vector<2x8xf32>
    %163 = tpu.matmul %161, %162, %cst_40 {dimension_numbers = #tpu.dot_dimension_numbers<[1], [0], [0], [1], [0, 0, 1, 1], [], []>} : vector<2x32xf32>, vector<32x8xf32>, vector<2x8xf32> -> vector<2x8xf32>
    %164 = arith.addf %141, %163 : vector<2x8xf32>
    %165 = vector.extract_strided_slice %14 {offsets = [0, 6, 0], sizes = [2, 1, 128], strides = [1, 1, 1]} : vector<2x8x128xf32> to vector<2x1x128xf32>
    %166 = vector.shape_cast %165 : vector<2x1x128xf32> to vector<2x128xf32>
    %cst_41 = arith.constant dense<0.000000e+00> : vector<2x128xf32>
    %167 = tpu.matmul %161, %15, %cst_41 {dimension_numbers = #tpu.dot_dimension_numbers<[1], [0], [0], [1], [0, 0, 1, 1], [], []>} : vector<2x32xf32>, vector<32x128xf32>, vector<2x128xf32> -> vector<2x128xf32>
    %168 = arith.addf %166, %167 : vector<2x128xf32>
    %169 = math.tanh %168 : vector<2x128xf32>
    %170 = arith.negf %168 : vector<2x128xf32>
    %171 = math.exp %170 : vector<2x128xf32>
    %cst_42 = arith.constant 1.000000e+00 : f32
    %172 = vector.broadcast %cst_42 : f32 to vector<2x128xf32>
    %173 = arith.addf %172, %171 : vector<2x128xf32>
    %174 = arith.divf %172, %173 : vector<2x128xf32>
    %175 = arith.select %21, %169, %174 : vector<2x128xi1>, vector<2x128xf32>
    %176 = vector.extract_strided_slice %175 {offsets = [0, 0], sizes = [2, 32], strides = [1, 1]} : vector<2x128xf32> to vector<2x32xf32>
    %177 = vector.extract_strided_slice %175 {offsets = [0, 32], sizes = [2, 32], strides = [1, 1]} : vector<2x128xf32> to vector<2x32xf32>
    %178 = vector.extract_strided_slice %175 {offsets = [0, 64], sizes = [2, 32], strides = [1, 1]} : vector<2x128xf32> to vector<2x32xf32>
    %179 = vector.extract_strided_slice %175 {offsets = [0, 96], sizes = [2, 32], strides = [1, 1]} : vector<2x128xf32> to vector<2x32xf32>
    %180 = arith.mulf %177, %159 : vector<2x32xf32>
    %181 = arith.mulf %176, %178 : vector<2x32xf32>
    %182 = arith.addf %180, %181 : vector<2x32xf32>
    %183 = math.tanh %182 : vector<2x32xf32>
    %184 = arith.mulf %179, %183 : vector<2x32xf32>
    %c192 = arith.constant 192 : index
    %c0_43 = arith.constant 0 : index
    %185 = vector.load %arg5[%c192, %c0_43] : memref<256x8xf32, #tpu.memory_space<vmem>>, vector<32x8xf32>
    %cst_44 = arith.constant dense<0.000000e+00> : vector<2x8xf32>
    %186 = tpu.matmul %184, %185, %cst_44 {dimension_numbers = #tpu.dot_dimension_numbers<[1], [0], [0], [1], [0, 0, 1, 1], [], []>} : vector<2x32xf32>, vector<32x8xf32>, vector<2x8xf32> -> vector<2x8xf32>
    %187 = arith.addf %164, %186 : vector<2x8xf32>
    %188 = vector.extract_strided_slice %14 {offsets = [0, 7, 0], sizes = [2, 1, 128], strides = [1, 1, 1]} : vector<2x8x128xf32> to vector<2x1x128xf32>
    %189 = vector.shape_cast %188 : vector<2x1x128xf32> to vector<2x128xf32>
    %cst_45 = arith.constant dense<0.000000e+00> : vector<2x128xf32>
    %190 = tpu.matmul %184, %15, %cst_45 {dimension_numbers = #tpu.dot_dimension_numbers<[1], [0], [0], [1], [0, 0, 1, 1], [], []>} : vector<2x32xf32>, vector<32x128xf32>, vector<2x128xf32> -> vector<2x128xf32>
    %191 = arith.addf %189, %190 : vector<2x128xf32>
    %192 = math.tanh %191 : vector<2x128xf32>
    %193 = arith.negf %191 : vector<2x128xf32>
    %194 = math.exp %193 : vector<2x128xf32>
    %cst_46 = arith.constant 1.000000e+00 : f32
    %195 = vector.broadcast %cst_46 : f32 to vector<2x128xf32>
    %196 = arith.addf %195, %194 : vector<2x128xf32>
    %197 = arith.divf %195, %196 : vector<2x128xf32>
    %198 = arith.select %21, %192, %197 : vector<2x128xi1>, vector<2x128xf32>
    %199 = vector.extract_strided_slice %198 {offsets = [0, 0], sizes = [2, 32], strides = [1, 1]} : vector<2x128xf32> to vector<2x32xf32>
    %200 = vector.extract_strided_slice %198 {offsets = [0, 32], sizes = [2, 32], strides = [1, 1]} : vector<2x128xf32> to vector<2x32xf32>
    %201 = vector.extract_strided_slice %198 {offsets = [0, 64], sizes = [2, 32], strides = [1, 1]} : vector<2x128xf32> to vector<2x32xf32>
    %202 = vector.extract_strided_slice %198 {offsets = [0, 96], sizes = [2, 32], strides = [1, 1]} : vector<2x128xf32> to vector<2x32xf32>
    %203 = arith.mulf %200, %182 : vector<2x32xf32>
    %204 = arith.mulf %199, %201 : vector<2x32xf32>
    %205 = arith.addf %203, %204 : vector<2x32xf32>
    %206 = math.tanh %205 : vector<2x32xf32>
    %207 = arith.mulf %202, %206 : vector<2x32xf32>
    %c224 = arith.constant 224 : index
    %c0_47 = arith.constant 0 : index
    %208 = vector.load %arg5[%c224, %c0_47] : memref<256x8xf32, #tpu.memory_space<vmem>>, vector<32x8xf32>
    %cst_48 = arith.constant dense<0.000000e+00> : vector<2x8xf32>
    %209 = tpu.matmul %207, %208, %cst_48 {dimension_numbers = #tpu.dot_dimension_numbers<[1], [0], [0], [1], [0, 0, 1, 1], [], []>} : vector<2x32xf32>, vector<32x8xf32>, vector<2x8xf32> -> vector<2x8xf32>
    %210 = arith.addf %187, %209 : vector<2x8xf32>
    %c0_49 = arith.constant 0 : index
    %c0_50 = arith.constant 0 : index
    %211 = vector.load %arg7[%c0_49, %c0_50] : memref<8x2xf32, #tpu.memory_space<vmem>>, vector<8x2xf32>
    %cst_51 = arith.constant dense<0.000000e+00> : vector<2x2xf32>
    %212 = tpu.matmul %210, %211, %cst_51 {dimension_numbers = #tpu.dot_dimension_numbers<[1], [0], [0], [1], [0, 0, 1, 1], [], []>} : vector<2x8xf32>, vector<8x2xf32>, vector<2x2xf32> -> vector<2x2xf32>
    %c0_52 = arith.constant 0 : index
    %c0_53 = arith.constant 0 : index
    %213 = vector.load %arg8[%c0_52, %c0_53] : memref<1x2xf32, #tpu.memory_space<vmem>>, vector<1x2xf32>
    %214 = vector.broadcast %213 : vector<1x2xf32> to vector<2x2xf32>
    %215 = arith.addf %212, %214 : vector<2x2xf32>
    %c0_54 = arith.constant 0 : index
    %c0_55 = arith.constant 0 : index
    %216 = vector.load %arg9[%c0_54, %c0_55] : memref<2x2xf32, #tpu.memory_space<vmem>>, vector<2x2xf32>
    tpu.vector_store %arg9[%c0_54, %c0_55], %215 {strides = array<i32>} : memref<2x2xf32, #tpu.memory_space<vmem>>, vector<2x2xf32>,
    return
  }
}

</mosaic_0001>

<llo_original>
// kernel: simple_model_forward.1
$region0: #{simple_model_forward.1}
  #allocation0 [shape = 'u32[]', space=smem, size = 0x4, offset = 0x4, fixed_abs, tag = 'smem constant byte address 0x4 - core index']
  #allocation1 [shape = 'u32[144,128]{1,0:T(1,128)}', space=vmem, size = 0x12000, scoped, tag = 'internal scratch']
  %s0 = inlined_call_operand.vmem [shape: s32[16,1], index: 0, kind: input, shape index: {}]
  %s1 = inlined_call_operand.vmem [shape: f32[51,16], index: 1, kind: input, shape index: {}]
  %s2 = inlined_call_operand.vmem [shape: f32[16,128], index: 2, kind: input, shape index: {}]
  %s3 = inlined_call_operand.vmem [shape: f32[32,128], index: 3, kind: input, shape index: {}]
  %s4 = inlined_call_operand.vmem [shape: f32[1,128], index: 4, kind: input, shape index: {}]
  %s5 = inlined_call_operand.vmem [shape: f32[256,8], index: 5, kind: input, shape index: {}]
  %s6 = inlined_call_operand.vmem [shape: f32[1,8], index: 6, kind: input, shape index: {}]
  %s7 = inlined_call_operand.vmem [shape: f32[8,2], index: 7, kind: input, shape index: {}]
  %s8 = inlined_call_operand.vmem [shape: f32[1,2], index: 8, kind: input, shape index: {}]
  %s9 = inlined_call_operand.hbm [shape: f32[2,2], index: 9, kind: output, shape index: {}]
  %s10 = sld [smem:[#allocation0]]
  $region46: #{simple_model_forward.1} parent=0
    _
  %s12 = ssub.s32 1, %s10
  %s13 = scalar_select 0, %s12, %s10
  $region1: #{simple_model_forward.1} parent=0
    #allocation2 [shape = 'u8[1024]{0}', space=vmem, size = 0x400, scoped, tag = 'output window, operand 0, single buffered']
    #allocation3 [shape = 's32[1]{0}', space=sflag, size = 0x4, scoped, tag = 'scoped memory for simple_model_forward.1']
    %14 = vsyncpa [#allocation3], 0
    // Predicated region
    $region2: #{simple_model_forward.1} parent=1 // pred_check
      _
    $region3: #{simple_model_forward.1} parent=1 // pred_check_branch
      %16 = sbr.rel (0) target = $region5
    $region4: #{simple_model_forward.1} parent=1 // pred_region
      _
    $region5: #{simple_model_forward.1} parent=1 // pred_fallthru
      _
    // Predicated region
    $region6: #{simple_model_forward.1} parent=1 // pred_check
      _
    $region7: #{simple_model_forward.1} parent=1 // pred_check_branch
      %18 = sbr.rel (0) target = $region9
    $region8: #{simple_model_forward.1} parent=1 // pred_region
      _
    $region9: #{simple_model_forward.1} parent=1 // pred_fallthru
      _
    // Predicated region
    $region10: #{simple_model_forward.1} parent=1 // pred_check
      _
    $region11: #{simple_model_forward.1} parent=1 // pred_check_branch
      %20 = sbr.rel (0) target = $region13
    $region12: #{simple_model_forward.1} parent=1 // pred_region
      _
    $region13: #{simple_model_forward.1} parent=1 // pred_fallthru
      _
    // Predicated region
    $region14: #{simple_model_forward.1} parent=1 // pred_check
      _
    $region15: #{simple_model_forward.1} parent=1 // pred_check_branch
      %22 = sbr.rel (0) target = $region17
    $region16: #{simple_model_forward.1} parent=1 // pred_region
      _
    $region17: #{simple_model_forward.1} parent=1 // pred_fallthru
      _
    // Predicated region
    $region18: #{simple_model_forward.1} parent=1 // pred_check
      _
    $region19: #{simple_model_forward.1} parent=1 // pred_check_branch
      %24 = sbr.rel (0) target = $region21
    $region20: #{simple_model_forward.1} parent=1 // pred_region
      _
    $region21: #{simple_model_forward.1} parent=1 // pred_fallthru
      _
    // Predicated region
    $region22: #{simple_model_forward.1} parent=1 // pred_check
      _
    $region23: #{simple_model_forward.1} parent=1 // pred_check_branch
      %26 = sbr.rel (0) target = $region25
    $region24: #{simple_model_forward.1} parent=1 // pred_region
      _
    $region25: #{simple_model_forward.1} parent=1 // pred_fallthru
      _
    // Predicated region
    $region26: #{simple_model_forward.1} parent=1 // pred_check
      _
    $region27: #{simple_model_forward.1} parent=1 // pred_check_branch
      %28 = sbr.rel (0) target = $region29
    $region28: #{simple_model_forward.1} parent=1 // pred_region
      _
    $region29: #{simple_model_forward.1} parent=1 // pred_fallthru
      _
    // Predicated region
    $region30: #{simple_model_forward.1} parent=1 // pred_check
      _
    $region31: #{simple_model_forward.1} parent=1 // pred_check_branch
      %30 = sbr.rel (0) target = $region33
    $region32: #{simple_model_forward.1} parent=1 // pred_region
      _
    $region33: #{simple_model_forward.1} parent=1 // pred_fallthru
      _
    // Predicated region
    $region34: #{simple_model_forward.1} parent=1 // pred_check
      _
    $region35: #{simple_model_forward.1} parent=1 // pred_check_branch
      %32 = sbr.rel (0) target = $region37
    $region36: #{simple_model_forward.1} parent=1 // pred_region
      _
    $region37: #{simple_model_forward.1} parent=1 // pred_fallthru
      _
    %v33 = vld [vmem:[%s0] sm:$0xff]
    %v34 = vld [vmem:[%s0 + $0x8] sm:$0xff]
    %v35 = vlaneseq
    %v36 = vand.u32 %v35, 127
    %37 = vset.pattern.permute.xlu0 0
    %38 = vperm.xlu0 %37, %v33
    %v39 = vpop.permute.xlu0 %38
    %40 = vset.pattern.permute.xlu0 0
    %41 = vperm.xlu0 %40, %v34
    %v42 = vpop.permute.xlu0 %41
    %vm43 = vcmp.eq.s32.totalorder %v39, %v36
    %vm44 = vcmp.eq.s32.totalorder %v42, %v36
    %v45 = vsel %vm43, 1.0, 0.0
    %v46 = vsel %vm44, 1.0, 0.0
    %v47 = vld [vmem:[%s1] sm:$0xff]
    %v48 = vld [vmem:[%s1 + $0x8] sm:$0xff]
    %v49 = vld [vmem:[%s1 + $0x10] sm:$0xff]
    %v50 = vld [vmem:[%s1 + $0x18] sm:$0xff]
    %v51 = vld [vmem:[%s1 + $0x20] sm:$0xff]
    %v52 = vld [vmem:[%s1 + $0x28] sm:$0xff]
    %v53 = vld [vmem:[%s1 + $0x30] sm:$0x7]
    %vm54 = vcmask 416768
    %v56 = vsel %vm54, %v45, 0
    %v59 = vsel %vm54, %v46, 0
    %vm61 = vcmask 1042432
    %v63 = vsel %vm61, %v53, 0
    %65 = vmatprep.subr.mxu0 0.0
    %v66 = vand.u32 %v47, 4294901760
    %67 = vmatpush1.msra.mxu0 %v66
    %68 = vmatprep.subr.mxu0 0.0
    %v69 = vand.u32 %v48, 4294901760
    %70 = vmatpush1.msra.mxu0 %v69
    %71 = vmatprep.subr.mxu0 0.0
    %v72 = vand.u32 %v49, 4294901760
    %73 = vmatpush1.msra.mxu0 %v72
    %74 = vmatprep.subr.mxu0 0.0
    %v75 = vand.u32 %v50, 4294901760
    %76 = vmatpush1.msra.mxu0 %v75
    %77 = vmatprep.subr.mxu0 0.0
    %v78 = vand.u32 %v51, 4294901760
    %79 = vmatpush1.msra.mxu0 %v78
    %80 = vmatprep.subr.mxu0 0.0
    %v81 = vand.u32 %v52, 4294901760
    %82 = vmatpush1.msra.mxu0 %v81
    %83 = vmatprep.subr.mxu0 0.0
    %v84 = vand.u32 %v63, 4294901760
    %85 = vmatpush1.msra.mxu0 %v84
    %86 = vmatprep.subr.mxu0 0.0
    %87 = vmatpush1.msra.mxu0 0.0
    %88 = vmatprep.subr.mxu0 0.0
    %89 = vmatpush1.msra.mxu0 0.0
    %90 = vmatprep.subr.mxu0 0.0
    %91 = vmatpush1.msra.mxu0 0.0
    %92 = vmatprep.subr.mxu0 0.0
    %93 = vmatpush1.msra.mxu0 0.0
    %94 = vmatprep.subr.mxu0 0.0
    %95 = vmatpush1.msra.mxu0 0.0
    %96 = vmatprep.subr.mxu0 0.0
    %97 = vmatpush1.msra.mxu0 0.0
    %98 = vmatprep.subr.mxu0 0.0
    %99 = vmatpush1.msra.mxu0 0.0
    %100 = vmatprep.subr.mxu0 0.0
    %101 = vmatpush1.msra.mxu0 0.0
    %102 = vmatprep.subr.mxu0 0.0
    %103 = vmatpush1.msra.mxu0 0.0
    %104 = vmatprep.subr.mxu0 0.0
    %105 = vmatpush1.msra.mxu0 0.0
    %106 = vmatprep.subr.mxu0 0.0
    %107 = vmatpush1.msra.mxu0 0.0
    %108 = vmatprep.subr.mxu0 0.0
    %109 = vmatpush1.msra.mxu0 0.0
    %110 = vmatprep.subr.mxu0 0.0
    %111 = vmatpush1.msra.mxu0 0.0
    %112 = vmatprep.subr.mxu0 0.0
    %113 = vmatpush1.msra.mxu0 0.0
    %114 = vmatprep.subr.mxu0 0.0
    %115 = vmatpush1.msra.mxu0 0.0
    %116 = vmatprep.subr.mxu0 0.0
    %117 = vmatpush1.msra.mxu0 0.0
    %118 = vmatprep.subr.mxu0 0.0
    %119 = vmatpush1.msra.mxu0 0.0
    %120 = vmatprep.subr.mxu0 0.0
    %121 = vmatpush1.msra.mxu0 0.0
    %122 = vmatprep.subr.mxu0 0.0
    %123 = vmatpush1.msra.mxu0 0.0
    %124 = vmatprep.subr.mxu0 0.0
    %125 = vmatpush1.msra.mxu0 0.0
    %126 = vmatprep.subr.mxu0 0.0
    %127 = vmatpush1.msra.mxu0 0.0
    %128 = vmatprep.subr.mxu0 0.0
    %129 = vmatpush1.msra.mxu0 0.0
    %130 = vmatprep.subr.mxu0 0.0
    %131 = vmatpush1.msra.mxu0 0.0
    %132 = vmatprep.subr.mxu0 0.0
    %133 = vmatpush1.msra.mxu0 0.0
    %134 = vmatprep.subr.mxu0 0.0
    %135 = vmatpush1.msra.mxu0 0.0
    %136 = vmatprep.mubr.f32.mxu0 0.0
    %v137 = vand.u32 %v56, 4294901760
    %v138 = vsub.f32 %v56, %v137
    %v139 = vand.u32 %v138, 4294901760
    %v140 = vsub.f32 %v138, %v139
    %v141 = vand.u32 %v140, 4294901760
    %142 = vmatmul.mubr.f32.gmra.mrb[0].mxu0 %v141
    %v143 = vpop.f32.mrb[0].mxu0
    %v144 = vadd.f32 0.0, %v143
    %v145 = vpop.f32.mrb[0].mxu0
    %146 = vmatprep.mubr.f32.mxu0 0.0
    %v147 = vand.u32 %v59, 4294901760
    %v148 = vsub.f32 %v59, %v147
    %v149 = vand.u32 %v148, 4294901760
    %v150 = vsub.f32 %v148, %v149
    %v151 = vand.u32 %v150, 4294901760
    %152 = vmatmul.mubr.f32.gmra.mrb[0].mxu0 %v151
    %v153 = vpop.f32.mrb[0].mxu0
    %v154 = vadd.f32 0.0, %v153
    %v155 = vpop.f32.mrb[0].mxu0
    %156 = vdwg.mxu0
    %157 = vmatprep.subr.mxu0 0.0
    %v158 = vand.u32 %v47, 4294901760
    %v159 = vsub.f32 %v47, %v158
    %v160 = vand.u32 %v159, 4294901760
    %v161 = vsub.f32 %v159, %v160
    %v162 = vand.u32 %v161, 4294901760
    %163 = vmatpush1.msra.mxu0 %v162
    %164 = vmatprep.subr.mxu0 0.0
    %v165 = vand.u32 %v48, 4294901760
    %v166 = vsub.f32 %v48, %v165
    %v167 = vand.u32 %v166, 4294901760
    %v168 = vsub.f32 %v166, %v167
    %v169 = vand.u32 %v168, 4294901760
    %170 = vmatpush1.msra.mxu0 %v169
    %171 = vmatprep.subr.mxu0 0.0
    %v172 = vand.u32 %v49, 4294901760
    %v173 = vsub.f32 %v49, %v172
    %v174 = vand.u32 %v173, 4294901760
    %v175 = vsub.f32 %v173, %v174
    %v176 = vand.u32 %v175, 4294901760
    %177 = vmatpush1.msra.mxu0 %v176
    %178 = vmatprep.subr.mxu0 0.0
    %v179 = vand.u32 %v50, 4294901760
    %v180 = vsub.f32 %v50, %v179
    %v181 = vand.u32 %v180, 4294901760
    %v182 = vsub.f32 %v180, %v181
    %v183 = vand.u32 %v182, 4294901760
    %184 = vmatpush1.msra.mxu0 %v183
    %185 = vmatprep.subr.mxu0 0.0
    %v186 = vand.u32 %v51, 4294901760
    %v187 = vsub.f32 %v51, %v186
    %v188 = vand.u32 %v187, 4294901760
    %v189 = vsub.f32 %v187, %v188
    %v190 = vand.u32 %v189, 4294901760
    %191 = vmatpush1.msra.mxu0 %v190
    %192 = vmatprep.subr.mxu0 0.0
    %v193 = vand.u32 %v52, 4294901760
    %v194 = vsub.f32 %v52, %v193
    %v195 = vand.u32 %v194, 4294901760
    %v196 = vsub.f32 %v194, %v195
    %v197 = vand.u32 %v196, 4294901760
    %198 = vmatpush1.msra.mxu0 %v197
    %199 = vmatprep.subr.mxu0 0.0
    %v200 = vand.u32 %v63, 4294901760
    %v201 = vsub.f32 %v63, %v200
    %v202 = vand.u32 %v201, 4294901760
    %v203 = vsub.f32 %v201, %v202
    %v204 = vand.u32 %v203, 4294901760
    %205 = vmatpush1.msra.mxu0 %v204
    %206 = vmatprep.subr.mxu0 0.0
    %207 = vmatpush1.msra.mxu0 0.0
    %208 = vmatprep.subr.mxu0 0.0
    %209 = vmatpush1.msra.mxu0 0.0
    %210 = vmatprep.subr.mxu0 0.0
    %211 = vmatpush1.msra.mxu0 0.0
    %212 = vmatprep.subr.mxu0 0.0
    %213 = vmatpush1.msra.mxu0 0.0
    %214 = vmatprep.subr.mxu0 0.0
    %215 = vmatpush1.msra.mxu0 0.0
    %216 = vmatprep.subr.mxu0 0.0
    %217 = vmatpush1.msra.mxu0 0.0
    %218 = vmatprep.subr.mxu0 0.0
    %219 = vmatpush1.msra.mxu0 0.0
    %220 = vmatprep.subr.mxu0 0.0
    %221 = vmatpush1.msra.mxu0 0.0
    %222 = vmatprep.subr.mxu0 0.0
    %223 = vmatpush1.msra.mxu0 0.0
    %224 = vmatprep.subr.mxu0 0.0
    %225 = vmatpush1.msra.mxu0 0.0
    %226 = vmatprep.subr.mxu0 0.0
    %227 = vmatpush1.msra.mxu0 0.0
    %228 = vmatprep.subr.mxu0 0.0
    %229 = vmatpush1.msra.mxu0 0.0
    %230 = vmatprep.subr.mxu0 0.0
    %231 = vmatpush1.msra.mxu0 0.0
    %232 = vmatprep.subr.mxu0 0.0
    %233 = vmatpush1.msra.mxu0 0.0
    %234 = vmatprep.subr.mxu0 0.0
    %235 = vmatpush1.msra.mxu0 0.0
    %236 = vmatprep.subr.mxu0 0.0
    %237 = vmatpush1.msra.mxu0 0.0
    %238 = vmatprep.subr.mxu0 0.0
    %239 = vmatpush1.msra.mxu0 0.0
    %240 = vmatprep.subr.mxu0 0.0
    %241 = vmatpush1.msra.mxu0 0.0
    %242 = vmatprep.subr.mxu0 0.0
    %243 = vmatpush1.msra.mxu0 0.0
    %244 = vmatprep.subr.mxu0 0.0
    %245 = vmatpush1.msra.mxu0 0.0
    %246 = vmatprep.subr.mxu0 0.0
    %247 = vmatpush1.msra.mxu0 0.0
    %248 = vmatprep.subr.mxu0 0.0
    %249 = vmatpush1.msra.mxu0 0.0
    %250 = vmatprep.subr.mxu0 0.0
    %251 = vmatpush1.msra.mxu0 0.0
    %252 = vmatprep.subr.mxu0 0.0
    %253 = vmatpush1.msra.mxu0 0.0
    %254 = vmatprep.subr.mxu0 0.0
    %255 = vmatpush1.msra.mxu0 0.0
    %256 = vmatprep.mubr.f32.mxu0 0.0
    %v257 = vand.u32 %v56, 4294901760
    %258 = vmatmul.mubr.f32.gmra.mrb[0].mxu0 %v257
    %v259 = vpop.f32.mrb[0].mxu0
    %v260 = vadd.f32 %v144, %v259
    %v261 = vpop.f32.mrb[0].mxu0
    %262 = vmatprep.mubr.f32.mxu0 0.0
    %v263 = vand.u32 %v59, 4294901760
    %264 = vmatmul.mubr.f32.gmra.mrb[0].mxu0 %v263
    %v265 = vpop.f32.mrb[0].mxu0
    %v266 = vadd.f32 %v154, %v265
    %v267 = vpop.f32.mrb[0].mxu0
    %268 = vdwg.mxu0
    %269 = vmatprep.subr.mxu0 0.0
    %v270 = vand.u32 %v47, 4294901760
    %v271 = vsub.f32 %v47, %v270
    %272 = vmatpush1.msra.mxu0 %v271
    %273 = vmatprep.subr.mxu0 0.0
    %v274 = vand.u32 %v48, 4294901760
    %v275 = vsub.f32 %v48, %v274
    %276 = vmatpush1.msra.mxu0 %v275
    %277 = vmatprep.subr.mxu0 0.0
    %v278 = vand.u32 %v49, 4294901760
    %v279 = vsub.f32 %v49, %v278
    %280 = vmatpush1.msra.mxu0 %v279
    %281 = vmatprep.subr.mxu0 0.0
    %v282 = vand.u32 %v50, 4294901760
    %v283 = vsub.f32 %v50, %v282
    %284 = vmatpush1.msra.mxu0 %v283
    %285 = vmatprep.subr.mxu0 0.0
    %v286 = vand.u32 %v51, 4294901760
    %v287 = vsub.f32 %v51, %v286
    %288 = vmatpush1.msra.mxu0 %v287
    %289 = vmatprep.subr.mxu0 0.0
    %v290 = vand.u32 %v52, 4294901760
    %v291 = vsub.f32 %v52, %v290
    %292 = vmatpush1.msra.mxu0 %v291
    %293 = vmatprep.subr.mxu0 0.0
    %v294 = vand.u32 %v63, 4294901760
    %v295 = vsub.f32 %v63, %v294
    %296 = vmatpush1.msra.mxu0 %v295
    %297 = vmatprep.subr.mxu0 0.0
    %298 = vmatpush1.msra.mxu0 0.0
    %299 = vmatprep.subr.mxu0 0.0
    %300 = vmatpush1.msra.mxu0 0.0
    %301 = vmatprep.subr.mxu0 0.0
    %302 = vmatpush1.msra.mxu0 0.0
    %303 = vmatprep.subr.mxu0 0.0
    %304 = vmatpush1.msra.mxu0 0.0
    %305 = vmatprep.subr.mxu0 0.0
    %306 = vmatpush1.msra.mxu0 0.0
    %307 = vmatprep.subr.mxu0 0.0
    %308 = vmatpush1.msra.mxu0 0.0
    %309 = vmatprep.subr.mxu0 0.0
    %310 = vmatpush1.msra.mxu0 0.0
    %311 = vmatprep.subr.mxu0 0.0
    %312 = vmatpush1.msra.mxu0 0.0
    %313 = vmatprep.subr.mxu0 0.0
    %314 = vmatpush1.msra.mxu0 0.0
    %315 = vmatprep.subr.mxu0 0.0
    %316 = vmatpush1.msra.mxu0 0.0
    %317 = vmatprep.subr.mxu0 0.0
    %318 = vmatpush1.msra.mxu0 0.0
    %319 = vmatprep.subr.mxu0 0.0
    %320 = vmatpush1.msra.mxu0 0.0
    %321 = vmatprep.subr.mxu0 0.0
    %322 = vmatpush1.msra.mxu0 0.0
    %323 = vmatprep.subr.mxu0 0.0
    %324 = vmatpush1.msra.mxu0 0.0
    %325 = vmatprep.subr.mxu0 0.0
    %326 = vmatpush1.msra.mxu0 0.0
    %327 = vmatprep.subr.mxu0 0.0
    %328 = vmatpush1.msra.mxu0 0.0
    %329 = vmatprep.subr.mxu0 0.0
    %330 = vmatpush1.msra.mxu0 0.0
    %331 = vmatprep.subr.mxu0 0.0
    %332 = vmatpush1.msra.mxu0 0.0
    %333 = vmatprep.subr.mxu0 0.0
    %334 = vmatpush1.msra.mxu0 0.0
    %335 = vmatprep.subr.mxu0 0.0
    %336 = vmatpush1.msra.mxu0 0.0
    %337 = vmatprep.subr.mxu0 0.0
    %338 = vmatpush1.msra.mxu0 0.0
    %339 = vmatprep.subr.mxu0 0.0
    %340 = vmatpush1.msra.mxu0 0.0
    %341 = vmatprep.subr.mxu0 0.0
    %342 = vmatpush1.msra.mxu0 0.0
    %343 = vmatprep.subr.mxu0 0.0
    %344 = vmatpush1.msra.mxu0 0.0
    %345 = vmatprep.subr.mxu0 0.0
    %346 = vmatpush1.msra.mxu0 0.0
    %347 = vmatprep.mubr.f32.mxu0 0.0
    %v348 = vand.u32 %v56, 4294901760
    %v349 = vsub.f32 %v56, %v348
    %350 = vmatmul.mubr.f32.gmra.mrb[0].mxu0 %v349
    %v351 = vpop.f32.mrb[0].mxu0
    %v352 = vadd.f32 %v260, %v351
    %v353 = vpop.f32.mrb[0].mxu0
    %354 = vmatprep.mubr.f32.mxu0 0.0
    %v355 = vand.u32 %v59, 4294901760
    %v356 = vsub.f32 %v59, %v355
    %357 = vmatmul.mubr.f32.gmra.mrb[0].mxu0 %v356
    %v358 = vpop.f32.mrb[0].mxu0
    %v359 = vadd.f32 %v266, %v358
    %v360 = vpop.f32.mrb[0].mxu0
    %361 = vdwg.mxu0
    %362 = vmatprep.subr.mxu0 0.0
    %v363 = vand.u32 %v47, 4294901760
    %364 = vmatpush1.msra.mxu0 %v363
    %365 = vmatprep.subr.mxu0 0.0
    %v366 = vand.u32 %v48, 4294901760
    %367 = vmatpush1.msra.mxu0 %v366
    %368 = vmatprep.subr.mxu0 0.0
    %v369 = vand.u32 %v49, 4294901760
    %370 = vmatpush1.msra.mxu0 %v369
    %371 = vmatprep.subr.mxu0 0.0
    %v372 = vand.u32 %v50, 4294901760
    %373 = vmatpush1.msra.mxu0 %v372
    %374 = vmatprep.subr.mxu0 0.0
    %v375 = vand.u32 %v51, 4294901760
    %376 = vmatpush1.msra.mxu0 %v375
    %377 = vmatprep.subr.mxu0 0.0
    %v378 = vand.u32 %v52, 4294901760
    %379 = vmatpush1.msra.mxu0 %v378
    %380 = vmatprep.subr.mxu0 0.0
    %v381 = vand.u32 %v63, 4294901760
    %382 = vmatpush1.msra.mxu0 %v381
    %383 = vmatprep.subr.mxu0 0.0
    %384 = vmatpush1.msra.mxu0 0.0
    %385 = vmatprep.subr.mxu0 0.0
    %386 = vmatpush1.msra.mxu0 0.0
    %387 = vmatprep.subr.mxu0 0.0
    %388 = vmatpush1.msra.mxu0 0.0
    %389 = vmatprep.subr.mxu0 0.0
    %390 = vmatpush1.msra.mxu0 0.0
    %391 = vmatprep.subr.mxu0 0.0
    %392 = vmatpush1.msra.mxu0 0.0
    %393 = vmatprep.subr.mxu0 0.0
    %394 = vmatpush1.msra.mxu0 0.0
    %395 = vmatprep.subr.mxu0 0.0
    %396 = vmatpush1.msra.mxu0 0.0
    %397 = vmatprep.subr.mxu0 0.0
    %398 = vmatpush1.msra.mxu0 0.0
    %399 = vmatprep.subr.mxu0 0.0
    %400 = vmatpush1.msra.mxu0 0.0
    %401 = vmatprep.subr.mxu0 0.0
    %402 = vmatpush1.msra.mxu0 0.0
    %403 = vmatprep.subr.mxu0 0.0
    %404 = vmatpush1.msra.mxu0 0.0
    %405 = vmatprep.subr.mxu0 0.0
    %406 = vmatpush1.msra.mxu0 0.0
    %407 = vmatprep.subr.mxu0 0.0
    %408 = vmatpush1.msra.mxu0 0.0
    %409 = vmatprep.subr.mxu0 0.0
    %410 = vmatpush1.msra.mxu0 0.0
    %411 = vmatprep.subr.mxu0 0.0
    %412 = vmatpush1.msra.mxu0 0.0
    %413 = vmatprep.subr.mxu0 0.0
    %414 = vmatpush1.msra.mxu0 0.0
    %415 = vmatprep.subr.mxu0 0.0
    %416 = vmatpush1.msra.mxu0 0.0
    %417 = vmatprep.subr.mxu0 0.0
    %418 = vmatpush1.msra.mxu0 0.0
    %419 = vmatprep.subr.mxu0 0.0
    %420 = vmatpush1.msra.mxu0 0.0
    %421 = vmatprep.subr.mxu0 0.0
    %422 = vmatpush1.msra.mxu0 0.0
    %423 = vmatprep.subr.mxu0 0.0
    %424 = vmatpush1.msra.mxu0 0.0
    %425 = vmatprep.subr.mxu0 0.0
    %426 = vmatpush1.msra.mxu0 0.0
    %427 = vmatprep.subr.mxu0 0.0
    %428 = vmatpush1.msra.mxu0 0.0
    %429 = vmatprep.subr.mxu0 0.0
    %430 = vmatpush1.msra.mxu0 0.0
    %431 = vmatprep.subr.mxu0 0.0
    %432 = vmatpush1.msra.mxu0 0.0
    %433 = vmatprep.mubr.f32.mxu0 0.0
    %v434 = vand.u32 %v56, 4294901760
    %v435 = vsub.f32 %v56, %v434
    %v436 = vand.u32 %v435, 4294901760
    %437 = vmatmul.mubr.f32.gmra.mrb[0].mxu0 %v436
    %v438 = vpop.f32.mrb[0].mxu0
    %v439 = vadd.f32 %v352, %v438
    %v440 = vpop.f32.mrb[0].mxu0
    %441 = vmatprep.mubr.f32.mxu0 0.0
    %v442 = vand.u32 %v59, 4294901760
    %v443 = vsub.f32 %v59, %v442
    %v444 = vand.u32 %v443, 4294901760
    %445 = vmatmul.mubr.f32.gmra.mrb[0].mxu0 %v444
    %v446 = vpop.f32.mrb[0].mxu0
    %v447 = vadd.f32 %v359, %v446
    %v448 = vpop.f32.mrb[0].mxu0
    %449 = vdwg.mxu0
    %450 = vmatprep.subr.mxu0 0.0
    %v451 = vand.u32 %v47, 4294901760
    %v452 = vsub.f32 %v47, %v451
    %v453 = vand.u32 %v452, 4294901760
    %454 = vmatpush1.msra.mxu0 %v453
    %455 = vmatprep.subr.mxu0 0.0
    %v456 = vand.u32 %v48, 4294901760
    %v457 = vsub.f32 %v48, %v456
    %v458 = vand.u32 %v457, 4294901760
    %459 = vmatpush1.msra.mxu0 %v458
    %460 = vmatprep.subr.mxu0 0.0
    %v461 = vand.u32 %v49, 4294901760
    %v462 = vsub.f32 %v49, %v461
    %v463 = vand.u32 %v462, 4294901760
    %464 = vmatpush1.msra.mxu0 %v463
    %465 = vmatprep.subr.mxu0 0.0
    %v466 = vand.u32 %v50, 4294901760
    %v467 = vsub.f32 %v50, %v466
    %v468 = vand.u32 %v467, 4294901760
    %469 = vmatpush1.msra.mxu0 %v468
    %470 = vmatprep.subr.mxu0 0.0
    %v471 = vand.u32 %v51, 4294901760
    %v472 = vsub.f32 %v51, %v471
    %v473 = vand.u32 %v472, 4294901760
    %474 = vmatpush1.msra.mxu0 %v473
    %475 = vmatprep.subr.mxu0 0.0
    %v476 = vand.u32 %v52, 4294901760
    %v477 = vsub.f32 %v52, %v476
    %v478 = vand.u32 %v477, 4294901760
    %479 = vmatpush1.msra.mxu0 %v478
    %480 = vmatprep.subr.mxu0 0.0
    %v481 = vand.u32 %v63, 4294901760
    %v482 = vsub.f32 %v63, %v481
    %v483 = vand.u32 %v482, 4294901760
    %484 = vmatpush1.msra.mxu0 %v483
    %485 = vmatprep.subr.mxu0 0.0
    %486 = vmatpush1.msra.mxu0 0.0
    %487 = vmatprep.subr.mxu0 0.0
    %488 = vmatpush1.msra.mxu0 0.0
    %489 = vmatprep.subr.mxu0 0.0
    %490 = vmatpush1.msra.mxu0 0.0
    %491 = vmatprep.subr.mxu0 0.0
    %492 = vmatpush1.msra.mxu0 0.0
    %493 = vmatprep.subr.mxu0 0.0
    %494 = vmatpush1.msra.mxu0 0.0
    %495 = vmatprep.subr.mxu0 0.0
    %496 = vmatpush1.msra.mxu0 0.0
    %497 = vmatprep.subr.mxu0 0.0
    %498 = vmatpush1.msra.mxu0 0.0
    %499 = vmatprep.subr.mxu0 0.0
    %500 = vmatpush1.msra.mxu0 0.0
    %501 = vmatprep.subr.mxu0 0.0
    %502 = vmatpush1.msra.mxu0 0.0
    %503 = vmatprep.subr.mxu0 0.0
    %504 = vmatpush1.msra.mxu0 0.0
    %505 = vmatprep.subr.mxu0 0.0
    %506 = vmatpush1.msra.mxu0 0.0
    %507 = vmatprep.subr.mxu0 0.0
    %508 = vmatpush1.msra.mxu0 0.0
    %509 = vmatprep.subr.mxu0 0.0
    %510 = vmatpush1.msra.mxu0 0.0
    %511 = vmatprep.subr.mxu0 0.0
    %512 = vmatpush1.msra.mxu0 0.0
    %513 = vmatprep.subr.mxu0 0.0
    %514 = vmatpush1.msra.mxu0 0.0
    %515 = vmatprep.subr.mxu0 0.0
    %516 = vmatpush1.msra.mxu0 0.0
    %517 = vmatprep.subr.mxu0 0.0
    %518 = vmatpush1.msra.mxu0 0.0
    %519 = vmatprep.subr.mxu0 0.0
    %520 = vmatpush1.msra.mxu0 0.0
    %521 = vmatprep.subr.mxu0 0.0
    %522 = vmatpush1.msra.mxu0 0.0
    %523 = vmatprep.subr.mxu0 0.0
    %524 = vmatpush1.msra.mxu0 0.0
    %525 = vmatprep.subr.mxu0 0.0
    %526 = vmatpush1.msra.mxu0 0.0
    %527 = vmatprep.subr.mxu0 0.0
    %528 = vmatpush1.msra.mxu0 0.0
    %529 = vmatprep.subr.mxu0 0.0
    %530 = vmatpush1.msra.mxu0 0.0
    %531 = vmatprep.subr.mxu0 0.0
    %532 = vmatpush1.msra.mxu0 0.0
    %533 = vmatprep.subr.mxu0 0.0
    %534 = vmatpush1.msra.mxu0 0.0
    %535 = vmatprep.mubr.f32.mxu0 0.0
    %v536 = vand.u32 %v56, 4294901760
    %537 = vmatmul.mubr.f32.gmra.mrb[0].mxu0 %v536
    %v538 = vpop.f32.mrb[0].mxu0
    %v539 = vadd.f32 %v439, %v538
    %v540 = vpop.f32.mrb[0].mxu0
    %541 = vmatprep.mubr.f32.mxu0 0.0
    %v542 = vand.u32 %v59, 4294901760
    %543 = vmatmul.mubr.f32.gmra.mrb[0].mxu0 %v542
    %v544 = vpop.f32.mrb[0].mxu0
    %v545 = vadd.f32 %v447, %v544
    %v546 = vpop.f32.mrb[0].mxu0
    %547 = vdwg.mxu0
    %548 = vmatprep.subr.mxu0 0.0
    %v549 = vand.u32 %v47, 4294901760
    %550 = vmatpush1.msra.mxu0 %v549
    %551 = vmatprep.subr.mxu0 0.0
    %v552 = vand.u32 %v48, 4294901760
    %553 = vmatpush1.msra.mxu0 %v552
    %554 = vmatprep.subr.mxu0 0.0
    %v555 = vand.u32 %v49, 4294901760
    %556 = vmatpush1.msra.mxu0 %v555
    %557 = vmatprep.subr.mxu0 0.0
    %v558 = vand.u32 %v50, 4294901760
    %559 = vmatpush1.msra.mxu0 %v558
    %560 = vmatprep.subr.mxu0 0.0
    %v561 = vand.u32 %v51, 4294901760
    %562 = vmatpush1.msra.mxu0 %v561
    %563 = vmatprep.subr.mxu0 0.0
    %v564 = vand.u32 %v52, 4294901760
    %565 = vmatpush1.msra.mxu0 %v564
    %566 = vmatprep.subr.mxu0 0.0
    %v567 = vand.u32 %v63, 4294901760
    %568 = vmatpush1.msra.mxu0 %v567
    %569 = vmatprep.subr.mxu0 0.0
    %570 = vmatpush1.msra.mxu0 0.0
    %571 = vmatprep.subr.mxu0 0.0
    %572 = vmatpush1.msra.mxu0 0.0
    %573 = vmatprep.subr.mxu0 0.0
    %574 = vmatpush1.msra.mxu0 0.0
    %575 = vmatprep.subr.mxu0 0.0
    %576 = vmatpush1.msra.mxu0 0.0
    %577 = vmatprep.subr.mxu0 0.0
    %578 = vmatpush1.msra.mxu0 0.0
    %579 = vmatprep.subr.mxu0 0.0
    %580 = vmatpush1.msra.mxu0 0.0
    %581 = vmatprep.subr.mxu0 0.0
    %582 = vmatpush1.msra.mxu0 0.0
    %583 = vmatprep.subr.mxu0 0.0
    %584 = vmatpush1.msra.mxu0 0.0
    %585 = vmatprep.subr.mxu0 0.0
    %586 = vmatpush1.msra.mxu0 0.0
    %587 = vmatprep.subr.mxu0 0.0
    %588 = vmatpush1.msra.mxu0 0.0
    %589 = vmatprep.subr.mxu0 0.0
    %590 = vmatpush1.msra.mxu0 0.0
    %591 = vmatprep.subr.mxu0 0.0
    %592 = vmatpush1.msra.mxu0 0.0
    %593 = vmatprep.subr.mxu0 0.0
    %594 = vmatpush1.msra.mxu0 0.0
    %595 = vmatprep.subr.mxu0 0.0
    %596 = vmatpush1.msra.mxu0 0.0
    %597 = vmatprep.subr.mxu0 0.0
    %598 = vmatpush1.msra.mxu0 0.0
    %599 = vmatprep.subr.mxu0 0.0
    %600 = vmatpush1.msra.mxu0 0.0
    %601 = vmatprep.subr.mxu0 0.0
    %602 = vmatpush1.msra.mxu0 0.0
    %603 = vmatprep.subr.mxu0 0.0
    %604 = vmatpush1.msra.mxu0 0.0
    %605 = vmatprep.subr.mxu0 0.0
    %606 = vmatpush1.msra.mxu0 0.0
    %607 = vmatprep.subr.mxu0 0.0
    %608 = vmatpush1.msra.mxu0 0.0
    %609 = vmatprep.subr.mxu0 0.0
    %610 = vmatpush1.msra.mxu0 0.0
    %611 = vmatprep.subr.mxu0 0.0
    %612 = vmatpush1.msra.mxu0 0.0
    %613 = vmatprep.subr.mxu0 0.0
    %614 = vmatpush1.msra.mxu0 0.0
    %615 = vmatprep.subr.mxu0 0.0
    %616 = vmatpush1.msra.mxu0 0.0
    %617 = vmatprep.subr.mxu0 0.0
    %618 = vmatpush1.msra.mxu0 0.0
    %619 = vmatprep.mubr.f32.mxu0 0.0
    %v620 = vand.u32 %v56, 4294901760
    %621 = vmatmul.mubr.f32.gmra.mrb[0].mxu0 %v620
    %v622 = vpop.f32.mrb[0].mxu0
    %v623 = vadd.f32 %v539, %v622
    %v624 = vpop.f32.mrb[0].mxu0
    %625 = vmatprep.mubr.f32.mxu0 0.0
    %v626 = vand.u32 %v59, 4294901760
    %627 = vmatmul.mubr.f32.gmra.mrb[0].mxu0 %v626
    %v628 = vpop.f32.mrb[0].mxu0
    %v629 = vadd.f32 %v545, %v628
    %v630 = vpop.f32.mrb[0].mxu0
    %631 = vdwg.mxu0
    %v632 = vld [vmem:[%s2] sm:$0xff]
    %v633 = vld [vmem:[%s2 + $0x8] sm:$0xff]
    %v634 = vld [vmem:[%s4] sm:$0x1]
    %v636 = vlaneseq
    %v637 = vshrl.u32 %v636, 7
    %v638 = vsub.s32 0, %v637
    %v639 = vrot.slane %v634, %v638
    %vm641 = vcmask 130048
    %v643 = vsel %vm641, %v623, 0
    %v646 = vsel %vm641, %v629, 0
    %648 = vmatprep.subr.mxu0 0.0
    %649 = vmatpush1.msra.mxu0 %v632
    %650 = vmatprep.subr.mxu0 0.0
    %651 = vmatpush1.msra.mxu0 %v633
    %652 = vmatprep.subr.mxu0 0.0
    %653 = vmatpush1.msra.mxu0 0.0
    %654 = vmatprep.subr.mxu0 0.0
    %655 = vmatpush1.msra.mxu0 0.0
    %656 = vmatprep.subr.mxu0 0.0
    %657 = vmatpush1.msra.mxu0 0.0
    %658 = vmatprep.subr.mxu0 0.0
    %659 = vmatpush1.msra.mxu0 0.0
    %660 = vmatprep.subr.mxu0 0.0
    %661 = vmatpush1.msra.mxu0 0.0
    %662 = vmatprep.subr.mxu0 0.0
    %663 = vmatpush1.msra.mxu0 0.0
    %664 = vmatprep.subr.mxu0 0.0
    %665 = vmatpush1.msra.mxu0 0.0
    %666 = vmatprep.subr.mxu0 0.0
    %667 = vmatpush1.msra.mxu0 0.0
    %668 = vmatprep.subr.mxu0 0.0
    %669 = vmatpush1.msra.mxu0 0.0
    %670 = vmatprep.subr.mxu0 0.0
    %671 = vmatpush1.msra.mxu0 0.0
    %672 = vmatprep.subr.mxu0 0.0
    %673 = vmatpush1.msra.mxu0 0.0
    %674 = vmatprep.subr.mxu0 0.0
    %675 = vmatpush1.msra.mxu0 0.0
    %676 = vmatprep.subr.mxu0 0.0
    %677 = vmatpush1.msra.mxu0 0.0
    %678 = vmatprep.subr.mxu0 0.0
    %679 = vmatpush1.msra.mxu0 0.0
    %680 = vmatprep.subr.mxu0 0.0
    %681 = vmatpush1.msra.mxu0 0.0
    %682 = vmatprep.subr.mxu0 0.0
    %683 = vmatpush1.msra.mxu0 0.0
    %684 = vmatprep.subr.mxu0 0.0
    %685 = vmatpush1.msra.mxu0 0.0
    %686 = vmatprep.subr.mxu0 0.0
    %687 = vmatpush1.msra.mxu0 0.0
    %688 = vmatprep.subr.mxu0 0.0
    %689 = vmatpush1.msra.mxu0 0.0
    %690 = vmatprep.subr.mxu0 0.0
    %691 = vmatpush1.msra.mxu0 0.0
    %692 = vmatprep.subr.mxu0 0.0
    %693 = vmatpush1.msra.mxu0 0.0
    %694 = vmatprep.subr.mxu0 0.0
    %695 = vmatpush1.msra.mxu0 0.0
    %696 = vmatprep.subr.mxu0 0.0
    %697 = vmatpush1.msra.mxu0 0.0
    %698 = vmatprep.subr.mxu0 0.0
    %699 = vmatpush1.msra.mxu0 0.0
    %700 = vmatprep.subr.mxu0 0.0
    %701 = vmatpush1.msra.mxu0 0.0
    %702 = vmatprep.subr.mxu0 0.0
    %703 = vmatpush1.msra.mxu0 0.0
    %704 = vmatprep.subr.mxu0 0.0
    %705 = vmatpush1.msra.mxu0 0.0
    %706 = vmatprep.subr.mxu0 0.0
    %707 = vmatpush1.msra.mxu0 0.0
    %708 = vmatprep.subr.mxu0 0.0
    %709 = vmatpush1.msra.mxu0 0.0
    %710 = vmatprep.subr.mxu0 0.0
    %711 = vmatpush1.msra.mxu0 0.0
    %712 = vmatprep.mubr.f32.mxu0 0.0
    %713 = vmatmul.mubr.f32.gmra.mrb[0].mxu0 %v643
    %v714 = vpop.f32.mrb[0].mxu0
    %v715 = vadd.f32 %v639, %v714
    %v716 = vpop.f32.mrb[0].mxu0
    %717 = vmatprep.mubr.f32.mxu0 0.0
    %718 = vmatmul.mubr.f32.gmra.mrb[0].mxu0 %v646
    %v719 = vpop.f32.mrb[0].mxu0
    %v720 = vadd.f32 %v639, %v719
    %v721 = vpop.f32.mrb[0].mxu0
    %722 = vdwg.mxu0
    %v723 = vld [vmem:[%s3] sm:$0xff]
    %v724 = vld [vmem:[%s3 + $0x8] sm:$0xff]
    %v725 = vld [vmem:[%s3 + $0x10] sm:$0xff]
    %v726 = vld [vmem:[%s3 + $0x18] sm:$0xff]
    %vm727 = vcmp.ge.s32.totalorder %v36, 64
    %vm728 = vcmp.lt.s32.totalorder %v36, 96
    %vm729 = vmand %vm727, %vm728
    %v730 = vld [vmem:[%s6] sm:$0x1]
    %v732 = vlaneseq
    %v733 = vshrl.u32 %v732, 7
    %v734 = vsub.s32 0, %v733
    %v735 = vrot.slane %v730, %v734
    %vm737 = vcmask 261120
    %v739 = vsel %vm737, 0.0, 0
    %741 = vmatprep.subr.mxu0 0.0
    %742 = vmatpush1.msra.mxu0 %v723
    %743 = vmatprep.subr.mxu0 0.0
    %744 = vmatpush1.msra.mxu0 %v724
    %745 = vmatprep.subr.mxu0 0.0
    %746 = vmatpush1.msra.mxu0 %v725
    %747 = vmatprep.subr.mxu0 0.0
    %748 = vmatpush1.msra.mxu0 %v726
    %749 = vmatprep.subr.mxu0 0.0
    %750 = vmatpush1.msra.mxu0 0.0
    %751 = vmatprep.subr.mxu0 0.0
    %752 = vmatpush1.msra.mxu0 0.0
    %753 = vmatprep.subr.mxu0 0.0
    %754 = vmatpush1.msra.mxu0 0.0
    %755 = vmatprep.subr.mxu0 0.0
    %756 = vmatpush1.msra.mxu0 0.0
    %757 = vmatprep.subr.mxu0 0.0
    %758 = vmatpush1.msra.mxu0 0.0
    %759 = vmatprep.subr.mxu0 0.0
    %760 = vmatpush1.msra.mxu0 0.0
    %761 = vmatprep.subr.mxu0 0.0
    %762 = vmatpush1.msra.mxu0 0.0
    %763 = vmatprep.subr.mxu0 0.0
    %764 = vmatpush1.msra.mxu0 0.0
    %765 = vmatprep.subr.mxu0 0.0
    %766 = vmatpush1.msra.mxu0 0.0
    %767 = vmatprep.subr.mxu0 0.0
    %768 = vmatpush1.msra.mxu0 0.0
    %769 = vmatprep.subr.mxu0 0.0
    %770 = vmatpush1.msra.mxu0 0.0
    %771 = vmatprep.subr.mxu0 0.0
    %772 = vmatpush1.msra.mxu0 0.0
    %773 = vmatprep.subr.mxu0 0.0
    %774 = vmatpush1.msra.mxu0 0.0
    %775 = vmatprep.subr.mxu0 0.0
    %776 = vmatpush1.msra.mxu0 0.0
    %777 = vmatprep.subr.mxu0 0.0
    %778 = vmatpush1.msra.mxu0 0.0
    %779 = vmatprep.subr.mxu0 0.0
    %780 = vmatpush1.msra.mxu0 0.0
    %781 = vmatprep.subr.mxu0 0.0
    %782 = vmatpush1.msra.mxu0 0.0
    %783 = vmatprep.subr.mxu0 0.0
    %784 = vmatpush1.msra.mxu0 0.0
    %785 = vmatprep.subr.mxu0 0.0
    %786 = vmatpush1.msra.mxu0 0.0
    %787 = vmatprep.subr.mxu0 0.0
    %788 = vmatpush1.msra.mxu0 0.0
    %789 = vmatprep.subr.mxu0 0.0
    %790 = vmatpush1.msra.mxu0 0.0
    %791 = vmatprep.subr.mxu0 0.0
    %792 = vmatpush1.msra.mxu0 0.0
    %793 = vmatprep.subr.mxu0 0.0
    %794 = vmatpush1.msra.mxu0 0.0
    %795 = vmatprep.subr.mxu0 0.0
    %796 = vmatpush1.msra.mxu0 0.0
    %797 = vmatprep.subr.mxu0 0.0
    %798 = vmatpush1.msra.mxu0 0.0
    %799 = vmatprep.subr.mxu0 0.0
    %800 = vmatpush1.msra.mxu0 0.0
    %801 = vmatprep.subr.mxu0 0.0
    %802 = vmatpush1.msra.mxu0 0.0
    %803 = vmatprep.subr.mxu0 0.0
    %804 = vmatpush1.msra.mxu0 0.0
    %805 = vmatprep.mubr.f32.mxu0 0.0
    %806 = vmatmul.mubr.f32.gmra.mrb[0].mxu0 %v739
    %v807 = vpop.f32.mrb[0].mxu0
    %v808 = vadd.f32 0.0, %v807
    %v809 = vpop.f32.mrb[0].mxu0
    %810 = vdwg.mxu0
    %v812 = vrot.slane %v808, 1
    %v815 = vadd.f32 %v715, %v808
    %v816 = vadd.f32 %v720, %v812
    %v817 = vtanh.pop %v815
    %v818 = vtanh.pop %v816
    %v819 = vxor.u32 %v815, 2147483648
    %v820 = vxor.u32 %v816, 2147483648
    %v821 = vmul.f32 %v819, 1.442695
    %v822 = vpow.pop %v821
    %v823 = vmul.f32 %v820, 1.442695
    %v824 = vpow.pop %v823
    %v825 = vadd.f32 %v822, 1.0
    %v826 = vadd.f32 %v824, 1.0
    %v827 = vrcp.pop %v825
    %v828 = vmul.f32 1.0, %v827
    %v829 = vrcp.pop %v826
    %v830 = vmul.f32 1.0, %v829
    %v833 = vrot.slane %v818, 7
    %vm834 = vcmask 1041409
    %v835 = vsel %vm834, %v833, %v817
    %v839 = vrot.slane %v830, 7
    %v840 = vsel %vm834, %v839, %v828
    %v842 = vsel %vm729, %v835, %v840
    %v843 = vmul.f32 %v842, 0.0
    %845 = vrot.lane.b32.xlu0 %v842, 64
    %v846 = vpop.permute.xlu0 %845
    %v848 = vmul.f32 %v842, %v846
    %850 = vrot.lane.b32.xlu0 %v848, 32
    %v851 = vpop.permute.xlu0 %850
    %v853 = vadd.f32 %v843, %v851
    %v854 = vtanh.pop %v853
    %856 = vrot.lane.b32.xlu0 %v854, 64
    %v857 = vpop.permute.xlu0 %856
    %v859 = vmul.f32 %v842, %v857
    %v860 = vld [vmem:[%s5] sm:$0xff]
    %v861 = vld [vmem:[%s5 + $0x8] sm:$0xff]
    %v862 = vld [vmem:[%s5 + $0x10] sm:$0xff]
    %v863 = vld [vmem:[%s5 + $0x18] sm:$0xff]
    %865 = vrot.lane.b32.xlu0 %v859, 32
    %v866 = vpop.permute.xlu0 %865
    %v867 = vsel %vm737, %v866, 0
    %869 = vmatprep.subr.mxu0 0.0
    %870 = vmatpush1.msra.mxu0 %v860
    %871 = vmatprep.subr.mxu0 0.0
    %872 = vmatpush1.msra.mxu0 %v861
    %873 = vmatprep.subr.mxu0 0.0
    %874 = vmatpush1.msra.mxu0 %v862
    %875 = vmatprep.subr.mxu0 0.0
    %876 = vmatpush1.msra.mxu0 %v863
    %877 = vmatprep.subr.mxu0 0.0
    %878 = vmatpush1.msra.mxu0 0.0
    %879 = vmatprep.subr.mxu0 0.0
    %880 = vmatpush1.msra.mxu0 0.0
    %881 = vmatprep.subr.mxu0 0.0
    %882 = vmatpush1.msra.mxu0 0.0
    %883 = vmatprep.subr.mxu0 0.0
    %884 = vmatpush1.msra.mxu0 0.0
    %885 = vmatprep.subr.mxu0 0.0
    %886 = vmatpush1.msra.mxu0 0.0
    %887 = vmatprep.subr.mxu0 0.0
    %888 = vmatpush1.msra.mxu0 0.0
    %889 = vmatprep.subr.mxu0 0.0
    %890 = vmatpush1.msra.mxu0 0.0
    %891 = vmatprep.subr.mxu0 0.0
    %892 = vmatpush1.msra.mxu0 0.0
    %893 = vmatprep.subr.mxu0 0.0
    %894 = vmatpush1.msra.mxu0 0.0
    %895 = vmatprep.subr.mxu0 0.0
    %896 = vmatpush1.msra.mxu0 0.0
    %897 = vmatprep.subr.mxu0 0.0
    %898 = vmatpush1.msra.mxu0 0.0
    %899 = vmatprep.subr.mxu0 0.0
    %900 = vmatpush1.msra.mxu0 0.0
    %901 = vmatprep.subr.mxu0 0.0
    %902 = vmatpush1.msra.mxu0 0.0
    %903 = vmatprep.subr.mxu0 0.0
    %904 = vmatpush1.msra.mxu0 0.0
    %905 = vmatprep.subr.mxu0 0.0
    %906 = vmatpush1.msra.mxu0 0.0
    %907 = vmatprep.subr.mxu0 0.0
    %908 = vmatpush1.msra.mxu0 0.0
    %909 = vmatprep.subr.mxu0 0.0
    %910 = vmatpush1.msra.mxu0 0.0
    %911 = vmatprep.subr.mxu0 0.0
    %912 = vmatpush1.msra.mxu0 0.0
    %913 = vmatprep.subr.mxu0 0.0
    %914 = vmatpush1.msra.mxu0 0.0
    %915 = vmatprep.subr.mxu0 0.0
    %916 = vmatpush1.msra.mxu0 0.0
    %917 = vmatprep.subr.mxu0 0.0
    %918 = vmatpush1.msra.mxu0 0.0
    %919 = vmatprep.subr.mxu0 0.0
    %920 = vmatpush1.msra.mxu0 0.0
    %921 = vmatprep.subr.mxu0 0.0
    %922 = vmatpush1.msra.mxu0 0.0
    %923 = vmatprep.subr.mxu0 0.0
    %924 = vmatpush1.msra.mxu0 0.0
    %925 = vmatprep.subr.mxu0 0.0
    %926 = vmatpush1.msra.mxu0 0.0
    %927 = vmatprep.subr.mxu0 0.0
    %928 = vmatpush1.msra.mxu0 0.0
    %929 = vmatprep.subr.mxu0 0.0
    %930 = vmatpush1.msra.mxu0 0.0
    %931 = vmatprep.subr.mxu0 0.0
    %932 = vmatpush1.msra.mxu0 0.0
    %933 = vmatprep.mubr.f32.mxu0 0.0
    %934 = vmatmul.mubr.f32.gmra.mrb[0].mxu0 %v867
    %v935 = vpop.f32.mrb[0].mxu0
    %v936 = vadd.f32 0.0, %v935
    %v937 = vpop.f32.mrb[0].mxu0
    %938 = vdwg.mxu0
    %v939 = vadd.f32 %v735, %v936
    %940 = vmatprep.subr.mxu0 0.0
    %941 = vmatpush1.msra.mxu0 %v723
    %942 = vmatprep.subr.mxu0 0.0
    %943 = vmatpush1.msra.mxu0 %v724
    %944 = vmatprep.subr.mxu0 0.0
    %945 = vmatpush1.msra.mxu0 %v725
    %946 = vmatprep.subr.mxu0 0.0
    %947 = vmatpush1.msra.mxu0 %v726
    %948 = vmatprep.subr.mxu0 0.0
    %949 = vmatpush1.msra.mxu0 0.0
    %950 = vmatprep.subr.mxu0 0.0
    %951 = vmatpush1.msra.mxu0 0.0
    %952 = vmatprep.subr.mxu0 0.0
    %953 = vmatpush1.msra.mxu0 0.0
    %954 = vmatprep.subr.mxu0 0.0
    %955 = vmatpush1.msra.mxu0 0.0
    %956 = vmatprep.subr.mxu0 0.0
    %957 = vmatpush1.msra.mxu0 0.0
    %958 = vmatprep.subr.mxu0 0.0
    %959 = vmatpush1.msra.mxu0 0.0
    %960 = vmatprep.subr.mxu0 0.0
    %961 = vmatpush1.msra.mxu0 0.0
    %962 = vmatprep.subr.mxu0 0.0
    %963 = vmatpush1.msra.mxu0 0.0
    %964 = vmatprep.subr.mxu0 0.0
    %965 = vmatpush1.msra.mxu0 0.0
    %966 = vmatprep.subr.mxu0 0.0
    %967 = vmatpush1.msra.mxu0 0.0
    %968 = vmatprep.subr.mxu0 0.0
    %969 = vmatpush1.msra.mxu0 0.0
    %970 = vmatprep.subr.mxu0 0.0
    %971 = vmatpush1.msra.mxu0 0.0
    %972 = vmatprep.subr.mxu0 0.0
    %973 = vmatpush1.msra.mxu0 0.0
    %974 = vmatprep.subr.mxu0 0.0
    %975 = vmatpush1.msra.mxu0 0.0
    %976 = vmatprep.subr.mxu0 0.0
    %977 = vmatpush1.msra.mxu0 0.0
    %978 = vmatprep.subr.mxu0 0.0
    %979 = vmatpush1.msra.mxu0 0.0
    %980 = vmatprep.subr.mxu0 0.0
    %981 = vmatpush1.msra.mxu0 0.0
    %982 = vmatprep.subr.mxu0 0.0
    %983 = vmatpush1.msra.mxu0 0.0
    %984 = vmatprep.subr.mxu0 0.0
    %985 = vmatpush1.msra.mxu0 0.0
    %986 = vmatprep.subr.mxu0 0.0
    %987 = vmatpush1.msra.mxu0 0.0
    %988 = vmatprep.subr.mxu0 0.0
    %989 = vmatpush1.msra.mxu0 0.0
    %990 = vmatprep.subr.mxu0 0.0
    %991 = vmatpush1.msra.mxu0 0.0
    %992 = vmatprep.subr.mxu0 0.0
    %993 = vmatpush1.msra.mxu0 0.0
    %994 = vmatprep.subr.mxu0 0.0
    %995 = vmatpush1.msra.mxu0 0.0
    %996 = vmatprep.subr.mxu0 0.0
    %997 = vmatpush1.msra.mxu0 0.0
    %998 = vmatprep.subr.mxu0 0.0
    %999 = vmatpush1.msra.mxu0 0.0
    %1000 = vmatprep.subr.mxu0 0.0
    %1001 = vmatpush1.msra.mxu0 0.0
    %1002 = vmatprep.subr.mxu0 0.0
    %1003 = vmatpush1.msra.mxu0 0.0
    %1004 = vmatprep.mubr.f32.mxu0 0.0
    %1005 = vmatmul.mubr.f32.gmra.mrb[0].mxu0 %v867
    %v1006 = vpop.f32.mrb[0].mxu0
    %v1007 = vadd.f32 0.0, %v1006
    %v1008 = vpop.f32.mrb[0].mxu0
    %1009 = vdwg.mxu0
    %v1011 = vrot.slane %v1007, 7
    %v1014 = vadd.f32 %v715, %v1011
    %v1015 = vadd.f32 %v720, %v1007
    %v1016 = vtanh.pop %v1014
    %v1017 = vtanh.pop %v1015
    %v1018 = vxor.u32 %v1014, 2147483648
    %v1019 = vxor.u32 %v1015, 2147483648
    %v1020 = vmul.f32 %v1018, 1.442695
    %v1021 = vpow.pop %v1020
    %v1022 = vmul.f32 %v1019, 1.442695
    %v1023 = vpow.pop %v1022
    %v1024 = vadd.f32 %v1021, 1.0
    %v1025 = vadd.f32 %v1023, 1.0
    %v1026 = vrcp.pop %v1024
    %v1027 = vmul.f32 1.0, %v1026
    %v1028 = vrcp.pop %v1025
    %v1029 = vmul.f32 1.0, %v1028
    %v1032 = vrot.slane %v1016, 1
    %v1033 = vsel %vm834, %v1017, %v1032
    %v1037 = vrot.slane %v1027, 1
    %v1038 = vsel %vm834, %v1029, %v1037
    %v1040 = vsel %vm729, %v1033, %v1038
    %v1041 = vmul.f32 %v1040, %v853
    %1043 = vrot.lane.b32.xlu0 %v1040, 64
    %v1044 = vpop.permute.xlu0 %1043
    %v1046 = vmul.f32 %v1040, %v1044
    %1048 = vrot.lane.b32.xlu0 %v1046, 32
    %v1049 = vpop.permute.xlu0 %1048
    %v1051 = vadd.f32 %v1041, %v1049
    %v1052 = vtanh.pop %v1051
    %1054 = vrot.lane.b32.xlu0 %v1052, 64
    %v1055 = vpop.permute.xlu0 %1054
    %v1057 = vmul.f32 %v1040, %v1055
    %v1058 = vld [vmem:[%s5 + $0x20] sm:$0xff]
    %v1059 = vld [vmem:[%s5 + $0x28] sm:$0xff]
    %v1060 = vld [vmem:[%s5 + $0x30] sm:$0xff]
    %v1061 = vld [vmem:[%s5 + $0x38] sm:$0xff]
    %1063 = vrot.lane.b32.xlu0 %v1057, 32
    %v1064 = vpop.permute.xlu0 %1063
    %v1065 = vsel %vm737, %v1064, 0
    %1067 = vmatprep.subr.mxu0 0.0
    %1068 = vmatpush1.msra.mxu0 %v1058
    %1069 = vmatprep.subr.mxu0 0.0
    %1070 = vmatpush1.msra.mxu0 %v1059
    %1071 = vmatprep.subr.mxu0 0.0
    %1072 = vmatpush1.msra.mxu0 %v1060
    %1073 = vmatprep.subr.mxu0 0.0
    %1074 = vmatpush1.msra.mxu0 %v1061
    %1075 = vmatprep.subr.mxu0 0.0
    %1076 = vmatpush1.msra.mxu0 0.0
    %1077 = vmatprep.subr.mxu0 0.0
    %1078 = vmatpush1.msra.mxu0 0.0
    %1079 = vmatprep.subr.mxu0 0.0
    %1080 = vmatpush1.msra.mxu0 0.0
    %1081 = vmatprep.subr.mxu0 0.0
    %1082 = vmatpush1.msra.mxu0 0.0
    %1083 = vmatprep.subr.mxu0 0.0
    %1084 = vmatpush1.msra.mxu0 0.0
    %1085 = vmatprep.subr.mxu0 0.0
    %1086 = vmatpush1.msra.mxu0 0.0
    %1087 = vmatprep.subr.mxu0 0.0
    %1088 = vmatpush1.msra.mxu0 0.0
    %1089 = vmatprep.subr.mxu0 0.0
    %1090 = vmatpush1.msra.mxu0 0.0
    %1091 = vmatprep.subr.mxu0 0.0
    %1092 = vmatpush1.msra.mxu0 0.0
    %1093 = vmatprep.subr.mxu0 0.0
    %1094 = vmatpush1.msra.mxu0 0.0
    %1095 = vmatprep.subr.mxu0 0.0
    %1096 = vmatpush1.msra.mxu0 0.0
    %1097 = vmatprep.subr.mxu0 0.0
    %1098 = vmatpush1.msra.mxu0 0.0
    %1099 = vmatprep.subr.mxu0 0.0
    %1100 = vmatpush1.msra.mxu0 0.0
    %1101 = vmatprep.subr.mxu0 0.0
    %1102 = vmatpush1.msra.mxu0 0.0
    %1103 = vmatprep.subr.mxu0 0.0
    %1104 = vmatpush1.msra.mxu0 0.0
    %1105 = vmatprep.subr.mxu0 0.0
    %1106 = vmatpush1.msra.mxu0 0.0
    %1107 = vmatprep.subr.mxu0 0.0
    %1108 = vmatpush1.msra.mxu0 0.0
    %1109 = vmatprep.subr.mxu0 0.0
    %1110 = vmatpush1.msra.mxu0 0.0
    %1111 = vmatprep.subr.mxu0 0.0
    %1112 = vmatpush1.msra.mxu0 0.0
    %1113 = vmatprep.subr.mxu0 0.0
    %1114 = vmatpush1.msra.mxu0 0.0
    %1115 = vmatprep.subr.mxu0 0.0
    %1116 = vmatpush1.msra.mxu0 0.0
    %1117 = vmatprep.subr.mxu0 0.0
    %1118 = vmatpush1.msra.mxu0 0.0
    %1119 = vmatprep.subr.mxu0 0.0
    %1120 = vmatpush1.msra.mxu0 0.0
    %1121 = vmatprep.subr.mxu0 0.0
    %1122 = vmatpush1.msra.mxu0 0.0
    %1123 = vmatprep.subr.mxu0 0.0
    %1124 = vmatpush1.msra.mxu0 0.0
    %1125 = vmatprep.subr.mxu0 0.0
    %1126 = vmatpush1.msra.mxu0 0.0
    %1127 = vmatprep.subr.mxu0 0.0
    %1128 = vmatpush1.msra.mxu0 0.0
    %1129 = vmatprep.subr.mxu0 0.0
    %1130 = vmatpush1.msra.mxu0 0.0
    %1131 = vmatprep.mubr.f32.mxu0 0.0
    %1132 = vmatmul.mubr.f32.gmra.mrb[0].mxu0 %v1065
    %v1133 = vpop.f32.mrb[0].mxu0
    %v1134 = vadd.f32 0.0, %v1133
    %v1135 = vpop.f32.mrb[0].mxu0
    %1136 = vdwg.mxu0
    %v1137 = vadd.f32 %v939, %v1134
    %1138 = vmatprep.subr.mxu0 0.0
    %1139 = vmatpush1.msra.mxu0 %v723
    %1140 = vmatprep.subr.mxu0 0.0
    %1141 = vmatpush1.msra.mxu0 %v724
    %1142 = vmatprep.subr.mxu0 0.0
    %1143 = vmatpush1.msra.mxu0 %v725
    %1144 = vmatprep.subr.mxu0 0.0
    %1145 = vmatpush1.msra.mxu0 %v726
    %1146 = vmatprep.subr.mxu0 0.0
    %1147 = vmatpush1.msra.mxu0 0.0
    %1148 = vmatprep.subr.mxu0 0.0
    %1149 = vmatpush1.msra.mxu0 0.0
    %1150 = vmatprep.subr.mxu0 0.0
    %1151 = vmatpush1.msra.mxu0 0.0
    %1152 = vmatprep.subr.mxu0 0.0
    %1153 = vmatpush1.msra.mxu0 0.0
    %1154 = vmatprep.subr.mxu0 0.0
    %1155 = vmatpush1.msra.mxu0 0.0
    %1156 = vmatprep.subr.mxu0 0.0
    %1157 = vmatpush1.msra.mxu0 0.0
    %1158 = vmatprep.subr.mxu0 0.0
    %1159 = vmatpush1.msra.mxu0 0.0
    %1160 = vmatprep.subr.mxu0 0.0
    %1161 = vmatpush1.msra.mxu0 0.0
    %1162 = vmatprep.subr.mxu0 0.0
    %1163 = vmatpush1.msra.mxu0 0.0
    %1164 = vmatprep.subr.mxu0 0.0
    %1165 = vmatpush1.msra.mxu0 0.0
    %1166 = vmatprep.subr.mxu0 0.0
    %1167 = vmatpush1.msra.mxu0 0.0
    %1168 = vmatprep.subr.mxu0 0.0
    %1169 = vmatpush1.msra.mxu0 0.0
    %1170 = vmatprep.subr.mxu0 0.0
    %1171 = vmatpush1.msra.mxu0 0.0
    %1172 = vmatprep.subr.mxu0 0.0
    %1173 = vmatpush1.msra.mxu0 0.0
    %1174 = vmatprep.subr.mxu0 0.0
    %1175 = vmatpush1.msra.mxu0 0.0
    %1176 = vmatprep.subr.mxu0 0.0
    %1177 = vmatpush1.msra.mxu0 0.0
    %1178 = vmatprep.subr.mxu0 0.0
    %1179 = vmatpush1.msra.mxu0 0.0
    %1180 = vmatprep.subr.mxu0 0.0
    %1181 = vmatpush1.msra.mxu0 0.0
    %1182 = vmatprep.subr.mxu0 0.0
    %1183 = vmatpush1.msra.mxu0 0.0
    %1184 = vmatprep.subr.mxu0 0.0
    %1185 = vmatpush1.msra.mxu0 0.0
    %1186 = vmatprep.subr.mxu0 0.0
    %1187 = vmatpush1.msra.mxu0 0.0
    %1188 = vmatprep.subr.mxu0 0.0
    %1189 = vmatpush1.msra.mxu0 0.0
    %1190 = vmatprep.subr.mxu0 0.0
    %1191 = vmatpush1.msra.mxu0 0.0
    %1192 = vmatprep.subr.mxu0 0.0
    %1193 = vmatpush1.msra.mxu0 0.0
    %1194 = vmatprep.subr.mxu0 0.0
    %1195 = vmatpush1.msra.mxu0 0.0
    %1196 = vmatprep.subr.mxu0 0.0
    %1197 = vmatpush1.msra.mxu0 0.0
    %1198 = vmatprep.subr.mxu0 0.0
    %1199 = vmatpush1.msra.mxu0 0.0
    %1200 = vmatprep.subr.mxu0 0.0
    %1201 = vmatpush1.msra.mxu0 0.0
    %1202 = vmatprep.mubr.f32.mxu0 0.0
    %1203 = vmatmul.mubr.f32.gmra.mrb[0].mxu0 %v1065
    %v1204 = vpop.f32.mrb[0].mxu0
    %v1205 = vadd.f32 0.0, %v1204
    %v1206 = vpop.f32.mrb[0].mxu0
    %1207 = vdwg.mxu0
    %v1209 = vrot.slane %v1205, 6
    %v1210 = vrot.slane %v1205, 7
    %v1213 = vadd.f32 %v715, %v1209
    %v1214 = vadd.f32 %v720, %v1210
    %v1215 = vtanh.pop %v1213
    %v1216 = vtanh.pop %v1214
    %v1217 = vxor.u32 %v1213, 2147483648
    %v1218 = vxor.u32 %v1214, 2147483648
    %v1219 = vmul.f32 %v1217, 1.442695
    %v1220 = vpow.pop %v1219
    %v1221 = vmul.f32 %v1218, 1.442695
    %v1222 = vpow.pop %v1221
    %v1223 = vadd.f32 %v1220, 1.0
    %v1224 = vadd.f32 %v1222, 1.0
    %v1225 = vrcp.pop %v1223
    %v1226 = vmul.f32 1.0, %v1225
    %v1227 = vrcp.pop %v1224
    %v1228 = vmul.f32 1.0, %v1227
    %v1231 = vrot.slane %v1215, 2
    %v1232 = vrot.slane %v1216, 1
    %v1233 = vsel %vm834, %v1232, %v1231
    %v1237 = vrot.slane %v1226, 2
    %v1238 = vrot.slane %v1228, 1
    %v1239 = vsel %vm834, %v1238, %v1237
    %v1241 = vsel %vm729, %v1233, %v1239
    %v1242 = vmul.f32 %v1241, %v1051
    %1244 = vrot.lane.b32.xlu0 %v1241, 64
    %v1245 = vpop.permute.xlu0 %1244
    %v1247 = vmul.f32 %v1241, %v1245
    %1249 = vrot.lane.b32.xlu0 %v1247, 32
    %v1250 = vpop.permute.xlu0 %1249
    %v1252 = vadd.f32 %v1242, %v1250
    %v1253 = vtanh.pop %v1252
    %1255 = vrot.lane.b32.xlu0 %v1253, 64
    %v1256 = vpop.permute.xlu0 %1255
    %v1258 = vmul.f32 %v1241, %v1256
    %v1259 = vld [vmem:[%s5 + $0x40] sm:$0xff]
    %v1260 = vld [vmem:[%s5 + $0x48] sm:$0xff]
    %v1261 = vld [vmem:[%s5 + $0x50] sm:$0xff]
    %v1262 = vld [vmem:[%s5 + $0x58] sm:$0xff]
    %1264 = vrot.lane.b32.xlu0 %v1258, 32
    %v1265 = vpop.permute.xlu0 %1264
    %v1266 = vsel %vm737, %v1265, 0
    %1268 = vmatprep.subr.mxu0 0.0
    %1269 = vmatpush1.msra.mxu0 %v1259
    %1270 = vmatprep.subr.mxu0 0.0
    %1271 = vmatpush1.msra.mxu0 %v1260
    %1272 = vmatprep.subr.mxu0 0.0
    %1273 = vmatpush1.msra.mxu0 %v1261
    %1274 = vmatprep.subr.mxu0 0.0
    %1275 = vmatpush1.msra.mxu0 %v1262
    %1276 = vmatprep.subr.mxu0 0.0
    %1277 = vmatpush1.msra.mxu0 0.0
    %1278 = vmatprep.subr.mxu0 0.0
    %1279 = vmatpush1.msra.mxu0 0.0
    %1280 = vmatprep.subr.mxu0 0.0
    %1281 = vmatpush1.msra.mxu0 0.0
    %1282 = vmatprep.subr.mxu0 0.0
    %1283 = vmatpush1.msra.mxu0 0.0
    %1284 = vmatprep.subr.mxu0 0.0
    %1285 = vmatpush1.msra.mxu0 0.0
    %1286 = vmatprep.subr.mxu0 0.0
    %1287 = vmatpush1.msra.mxu0 0.0
    %1288 = vmatprep.subr.mxu0 0.0
    %1289 = vmatpush1.msra.mxu0 0.0
    %1290 = vmatprep.subr.mxu0 0.0
    %1291 = vmatpush1.msra.mxu0 0.0
    %1292 = vmatprep.subr.mxu0 0.0
    %1293 = vmatpush1.msra.mxu0 0.0
    %1294 = vmatprep.subr.mxu0 0.0
    %1295 = vmatpush1.msra.mxu0 0.0
    %1296 = vmatprep.subr.mxu0 0.0
    %1297 = vmatpush1.msra.mxu0 0.0
    %1298 = vmatprep.subr.mxu0 0.0
    %1299 = vmatpush1.msra.mxu0 0.0
    %1300 = vmatprep.subr.mxu0 0.0
    %1301 = vmatpush1.msra.mxu0 0.0
    %1302 = vmatprep.subr.mxu0 0.0
    %1303 = vmatpush1.msra.mxu0 0.0
    %1304 = vmatprep.subr.mxu0 0.0
    %1305 = vmatpush1.msra.mxu0 0.0
    %1306 = vmatprep.subr.mxu0 0.0
    %1307 = vmatpush1.msra.mxu0 0.0
    %1308 = vmatprep.subr.mxu0 0.0
    %1309 = vmatpush1.msra.mxu0 0.0
    %1310 = vmatprep.subr.mxu0 0.0
    %1311 = vmatpush1.msra.mxu0 0.0
    %1312 = vmatprep.subr.mxu0 0.0
    %1313 = vmatpush1.msra.mxu0 0.0
    %1314 = vmatprep.subr.mxu0 0.0
    %1315 = vmatpush1.msra.mxu0 0.0
    %1316 = vmatprep.subr.mxu0 0.0
    %1317 = vmatpush1.msra.mxu0 0.0
    %1318 = vmatprep.subr.mxu0 0.0
    %1319 = vmatpush1.msra.mxu0 0.0
    %1320 = vmatprep.subr.mxu0 0.0
    %1321 = vmatpush1.msra.mxu0 0.0
    %1322 = vmatprep.subr.mxu0 0.0
    %1323 = vmatpush1.msra.mxu0 0.0
    %1324 = vmatprep.subr.mxu0 0.0
    %1325 = vmatpush1.msra.mxu0 0.0
    %1326 = vmatprep.subr.mxu0 0.0
    %1327 = vmatpush1.msra.mxu0 0.0
    %1328 = vmatprep.subr.mxu0 0.0
    %1329 = vmatpush1.msra.mxu0 0.0
    %1330 = vmatprep.subr.mxu0 0.0
    %1331 = vmatpush1.msra.mxu0 0.0
    %1332 = vmatprep.mubr.f32.mxu0 0.0
    %1333 = vmatmul.mubr.f32.gmra.mrb[0].mxu0 %v1266
    %v1334 = vpop.f32.mrb[0].mxu0
    %v1335 = vadd.f32 0.0, %v1334
    %v1336 = vpop.f32.mrb[0].mxu0
    %1337 = vdwg.mxu0
    %v1338 = vadd.f32 %v1137, %v1335
    %1339 = vmatprep.subr.mxu0 0.0
    %1340 = vmatpush1.msra.mxu0 %v723
    %1341 = vmatprep.subr.mxu0 0.0
    %1342 = vmatpush1.msra.mxu0 %v724
    %1343 = vmatprep.subr.mxu0 0.0
    %1344 = vmatpush1.msra.mxu0 %v725
    %1345 = vmatprep.subr.mxu0 0.0
    %1346 = vmatpush1.msra.mxu0 %v726
    %1347 = vmatprep.subr.mxu0 0.0
    %1348 = vmatpush1.msra.mxu0 0.0
    %1349 = vmatprep.subr.mxu0 0.0
    %1350 = vmatpush1.msra.mxu0 0.0
    %1351 = vmatprep.subr.mxu0 0.0
    %1352 = vmatpush1.msra.mxu0 0.0
    %1353 = vmatprep.subr.mxu0 0.0
    %1354 = vmatpush1.msra.mxu0 0.0
    %1355 = vmatprep.subr.mxu0 0.0
    %1356 = vmatpush1.msra.mxu0 0.0
    %1357 = vmatprep.subr.mxu0 0.0
    %1358 = vmatpush1.msra.mxu0 0.0
    %1359 = vmatprep.subr.mxu0 0.0
    %1360 = vmatpush1.msra.mxu0 0.0
    %1361 = vmatprep.subr.mxu0 0.0
    %1362 = vmatpush1.msra.mxu0 0.0
    %1363 = vmatprep.subr.mxu0 0.0
    %1364 = vmatpush1.msra.mxu0 0.0
    %1365 = vmatprep.subr.mxu0 0.0
    %1366 = vmatpush1.msra.mxu0 0.0
    %1367 = vmatprep.subr.mxu0 0.0
    %1368 = vmatpush1.msra.mxu0 0.0
    %1369 = vmatprep.subr.mxu0 0.0
    %1370 = vmatpush1.msra.mxu0 0.0
    %1371 = vmatprep.subr.mxu0 0.0
    %1372 = vmatpush1.msra.mxu0 0.0
    %1373 = vmatprep.subr.mxu0 0.0
    %1374 = vmatpush1.msra.mxu0 0.0
    %1375 = vmatprep.subr.mxu0 0.0
    %1376 = vmatpush1.msra.mxu0 0.0
    %1377 = vmatprep.subr.mxu0 0.0
    %1378 = vmatpush1.msra.mxu0 0.0
    %1379 = vmatprep.subr.mxu0 0.0
    %1380 = vmatpush1.msra.mxu0 0.0
    %1381 = vmatprep.subr.mxu0 0.0
    %1382 = vmatpush1.msra.mxu0 0.0
    %1383 = vmatprep.subr.mxu0 0.0
    %1384 = vmatpush1.msra.mxu0 0.0
    %1385 = vmatprep.subr.mxu0 0.0
    %1386 = vmatpush1.msra.mxu0 0.0
    %1387 = vmatprep.subr.mxu0 0.0
    %1388 = vmatpush1.msra.mxu0 0.0
    %1389 = vmatprep.subr.mxu0 0.0
    %1390 = vmatpush1.msra.mxu0 0.0
    %1391 = vmatprep.subr.mxu0 0.0
    %1392 = vmatpush1.msra.mxu0 0.0
    %1393 = vmatprep.subr.mxu0 0.0
    %1394 = vmatpush1.msra.mxu0 0.0
    %1395 = vmatprep.subr.mxu0 0.0
    %1396 = vmatpush1.msra.mxu0 0.0
    %1397 = vmatprep.subr.mxu0 0.0
    %1398 = vmatpush1.msra.mxu0 0.0
    %1399 = vmatprep.subr.mxu0 0.0
    %1400 = vmatpush1.msra.mxu0 0.0
    %1401 = vmatprep.subr.mxu0 0.0
    %1402 = vmatpush1.msra.mxu0 0.0
    %1403 = vmatprep.mubr.f32.mxu0 0.0
    %1404 = vmatmul.mubr.f32.gmra.mrb[0].mxu0 %v1266
    %v1405 = vpop.f32.mrb[0].mxu0
    %v1406 = vadd.f32 0.0, %v1405
    %v1407 = vpop.f32.mrb[0].mxu0
    %1408 = vdwg.mxu0
    %v1410 = vrot.slane %v1406, 5
    %v1411 = vrot.slane %v1406, 6
    %v1414 = vadd.f32 %v715, %v1410
    %v1415 = vadd.f32 %v720, %v1411
    %v1416 = vtanh.pop %v1414
    %v1417 = vtanh.pop %v1415
    %v1418 = vxor.u32 %v1414, 2147483648
    %v1419 = vxor.u32 %v1415, 2147483648
    %v1420 = vmul.f32 %v1418, 1.442695
    %v1421 = vpow.pop %v1420
    %v1422 = vmul.f32 %v1419, 1.442695
    %v1423 = vpow.pop %v1422
    %v1424 = vadd.f32 %v1421, 1.0
    %v1425 = vadd.f32 %v1423, 1.0
    %v1426 = vrcp.pop %v1424
    %v1427 = vmul.f32 1.0, %v1426
    %v1428 = vrcp.pop %v1425
    %v1429 = vmul.f32 1.0, %v1428
    %v1432 = vrot.slane %v1416, 3
    %v1433 = vrot.slane %v1417, 2
    %v1434 = vsel %vm834, %v1433, %v1432
    %v1438 = vrot.slane %v1427, 3
    %v1439 = vrot.slane %v1429, 2
    %v1440 = vsel %vm834, %v1439, %v1438
    %v1442 = vsel %vm729, %v1434, %v1440
    %v1443 = vmul.f32 %v1442, %v1252
    %1445 = vrot.lane.b32.xlu0 %v1442, 64
    %v1446 = vpop.permute.xlu0 %1445
    %v1448 = vmul.f32 %v1442, %v1446
    %1450 = vrot.lane.b32.xlu0 %v1448, 32
    %v1451 = vpop.permute.xlu0 %1450
    %v1453 = vadd.f32 %v1443, %v1451
    %v1454 = vtanh.pop %v1453
    %1456 = vrot.lane.b32.xlu0 %v1454, 64
    %v1457 = vpop.permute.xlu0 %1456
    %v1459 = vmul.f32 %v1442, %v1457
    %v1460 = vld [vmem:[%s5 + $0x60] sm:$0xff]
    %v1461 = vld [vmem:[%s5 + $0x68] sm:$0xff]
    %v1462 = vld [vmem:[%s5 + $0x70] sm:$0xff]
    %v1463 = vld [vmem:[%s5 + $0x78] sm:$0xff]
    %1465 = vrot.lane.b32.xlu0 %v1459, 32
    %v1466 = vpop.permute.xlu0 %1465
    %v1467 = vsel %vm737, %v1466, 0
    %1469 = vmatprep.subr.mxu0 0.0
    %1470 = vmatpush1.msra.mxu0 %v1460
    %1471 = vmatprep.subr.mxu0 0.0
    %1472 = vmatpush1.msra.mxu0 %v1461
    %1473 = vmatprep.subr.mxu0 0.0
    %1474 = vmatpush1.msra.mxu0 %v1462
    %1475 = vmatprep.subr.mxu0 0.0
    %1476 = vmatpush1.msra.mxu0 %v1463
    %1477 = vmatprep.subr.mxu0 0.0
    %1478 = vmatpush1.msra.mxu0 0.0
    %1479 = vmatprep.subr.mxu0 0.0
    %1480 = vmatpush1.msra.mxu0 0.0
    %1481 = vmatprep.subr.mxu0 0.0
    %1482 = vmatpush1.msra.mxu0 0.0
    %1483 = vmatprep.subr.mxu0 0.0
    %1484 = vmatpush1.msra.mxu0 0.0
    %1485 = vmatprep.subr.mxu0 0.0
    %1486 = vmatpush1.msra.mxu0 0.0
    %1487 = vmatprep.subr.mxu0 0.0
    %1488 = vmatpush1.msra.mxu0 0.0
    %1489 = vmatprep.subr.mxu0 0.0
    %1490 = vmatpush1.msra.mxu0 0.0
    %1491 = vmatprep.subr.mxu0 0.0
    %1492 = vmatpush1.msra.mxu0 0.0
    %1493 = vmatprep.subr.mxu0 0.0
    %1494 = vmatpush1.msra.mxu0 0.0
    %1495 = vmatprep.subr.mxu0 0.0
    %1496 = vmatpush1.msra.mxu0 0.0
    %1497 = vmatprep.subr.mxu0 0.0
    %1498 = vmatpush1.msra.mxu0 0.0
    %1499 = vmatprep.subr.mxu0 0.0
    %1500 = vmatpush1.msra.mxu0 0.0
    %1501 = vmatprep.subr.mxu0 0.0
    %1502 = vmatpush1.msra.mxu0 0.0
    %1503 = vmatprep.subr.mxu0 0.0
    %1504 = vmatpush1.msra.mxu0 0.0
    %1505 = vmatprep.subr.mxu0 0.0
    %1506 = vmatpush1.msra.mxu0 0.0
    %1507 = vmatprep.subr.mxu0 0.0
    %1508 = vmatpush1.msra.mxu0 0.0
    %1509 = vmatprep.subr.mxu0 0.0
    %1510 = vmatpush1.msra.mxu0 0.0
    %1511 = vmatprep.subr.mxu0 0.0
    %1512 = vmatpush1.msra.mxu0 0.0
    %1513 = vmatprep.subr.mxu0 0.0
    %1514 = vmatpush1.msra.mxu0 0.0
    %1515 = vmatprep.subr.mxu0 0.0
    %1516 = vmatpush1.msra.mxu0 0.0
    %1517 = vmatprep.subr.mxu0 0.0
    %1518 = vmatpush1.msra.mxu0 0.0
    %1519 = vmatprep.subr.mxu0 0.0
    %1520 = vmatpush1.msra.mxu0 0.0
    %1521 = vmatprep.subr.mxu0 0.0
    %1522 = vmatpush1.msra.mxu0 0.0
    %1523 = vmatprep.subr.mxu0 0.0
    %1524 = vmatpush1.msra.mxu0 0.0
    %1525 = vmatprep.subr.mxu0 0.0
    %1526 = vmatpush1.msra.mxu0 0.0
    %1527 = vmatprep.subr.mxu0 0.0
    %1528 = vmatpush1.msra.mxu0 0.0
    %1529 = vmatprep.subr.mxu0 0.0
    %1530 = vmatpush1.msra.mxu0 0.0
    %1531 = vmatprep.subr.mxu0 0.0
    %1532 = vmatpush1.msra.mxu0 0.0
    %1533 = vmatprep.mubr.f32.mxu0 0.0
    %1534 = vmatmul.mubr.f32.gmra.mrb[0].mxu0 %v1467
    %v1535 = vpop.f32.mrb[0].mxu0
    %v1536 = vadd.f32 0.0, %v1535
    %v1537 = vpop.f32.mrb[0].mxu0
    %1538 = vdwg.mxu0
    %v1539 = vadd.f32 %v1338, %v1536
    %1540 = vmatprep.subr.mxu0 0.0
    %1541 = vmatpush1.msra.mxu0 %v723
    %1542 = vmatprep.subr.mxu0 0.0
    %1543 = vmatpush1.msra.mxu0 %v724
    %1544 = vmatprep.subr.mxu0 0.0
    %1545 = vmatpush1.msra.mxu0 %v725
    %1546 = vmatprep.subr.mxu0 0.0
    %1547 = vmatpush1.msra.mxu0 %v726
    %1548 = vmatprep.subr.mxu0 0.0
    %1549 = vmatpush1.msra.mxu0 0.0
    %1550 = vmatprep.subr.mxu0 0.0
    %1551 = vmatpush1.msra.mxu0 0.0
    %1552 = vmatprep.subr.mxu0 0.0
    %1553 = vmatpush1.msra.mxu0 0.0
    %1554 = vmatprep.subr.mxu0 0.0
    %1555 = vmatpush1.msra.mxu0 0.0
    %1556 = vmatprep.subr.mxu0 0.0
    %1557 = vmatpush1.msra.mxu0 0.0
    %1558 = vmatprep.subr.mxu0 0.0
    %1559 = vmatpush1.msra.mxu0 0.0
    %1560 = vmatprep.subr.mxu0 0.0
    %1561 = vmatpush1.msra.mxu0 0.0
    %1562 = vmatprep.subr.mxu0 0.0
    %1563 = vmatpush1.msra.mxu0 0.0
    %1564 = vmatprep.subr.mxu0 0.0
    %1565 = vmatpush1.msra.mxu0 0.0
    %1566 = vmatprep.subr.mxu0 0.0
    %1567 = vmatpush1.msra.mxu0 0.0
    %1568 = vmatprep.subr.mxu0 0.0
    %1569 = vmatpush1.msra.mxu0 0.0
    %1570 = vmatprep.subr.mxu0 0.0
    %1571 = vmatpush1.msra.mxu0 0.0
    %1572 = vmatprep.subr.mxu0 0.0
    %1573 = vmatpush1.msra.mxu0 0.0
    %1574 = vmatprep.subr.mxu0 0.0
    %1575 = vmatpush1.msra.mxu0 0.0
    %1576 = vmatprep.subr.mxu0 0.0
    %1577 = vmatpush1.msra.mxu0 0.0
    %1578 = vmatprep.subr.mxu0 0.0
    %1579 = vmatpush1.msra.mxu0 0.0
    %1580 = vmatprep.subr.mxu0 0.0
    %1581 = vmatpush1.msra.mxu0 0.0
    %1582 = vmatprep.subr.mxu0 0.0
    %1583 = vmatpush1.msra.mxu0 0.0
    %1584 = vmatprep.subr.mxu0 0.0
    %1585 = vmatpush1.msra.mxu0 0.0
    %1586 = vmatprep.subr.mxu0 0.0
    %1587 = vmatpush1.msra.mxu0 0.0
    %1588 = vmatprep.subr.mxu0 0.0
    %1589 = vmatpush1.msra.mxu0 0.0
    %1590 = vmatprep.subr.mxu0 0.0
    %1591 = vmatpush1.msra.mxu0 0.0
    %1592 = vmatprep.subr.mxu0 0.0
    %1593 = vmatpush1.msra.mxu0 0.0
    %1594 = vmatprep.subr.mxu0 0.0
    %1595 = vmatpush1.msra.mxu0 0.0
    %1596 = vmatprep.subr.mxu0 0.0
    %1597 = vmatpush1.msra.mxu0 0.0
    %1598 = vmatprep.subr.mxu0 0.0
    %1599 = vmatpush1.msra.mxu0 0.0
    %1600 = vmatprep.subr.mxu0 0.0
    %1601 = vmatpush1.msra.mxu0 0.0
    %1602 = vmatprep.subr.mxu0 0.0
    %1603 = vmatpush1.msra.mxu0 0.0
    %1604 = vmatprep.mubr.f32.mxu0 0.0
    %1605 = vmatmul.mubr.f32.gmra.mrb[0].mxu0 %v1467
    %v1606 = vpop.f32.mrb[0].mxu0
    %v1607 = vadd.f32 0.0, %v1606
    %v1608 = vpop.f32.mrb[0].mxu0
    %1609 = vdwg.mxu0
    %v1611 = vrot.slane %v1607, 4
    %v1612 = vrot.slane %v1607, 5
    %v1615 = vadd.f32 %v715, %v1611
    %v1616 = vadd.f32 %v720, %v1612
    %v1617 = vtanh.pop %v1615
    %v1618 = vtanh.pop %v1616
    %v1619 = vxor.u32 %v1615, 2147483648
    %v1620 = vxor.u32 %v1616, 2147483648
    %v1621 = vmul.f32 %v1619, 1.442695
    %v1622 = vpow.pop %v1621
    %v1623 = vmul.f32 %v1620, 1.442695
    %v1624 = vpow.pop %v1623
    %v1625 = vadd.f32 %v1622, 1.0
    %v1626 = vadd.f32 %v1624, 1.0
    %v1627 = vrcp.pop %v1625
    %v1628 = vmul.f32 1.0, %v1627
    %v1629 = vrcp.pop %v1626
    %v1630 = vmul.f32 1.0, %v1629
    %v1633 = vrot.slane %v1617, 4
    %v1634 = vrot.slane %v1618, 3
    %v1635 = vsel %vm834, %v1634, %v1633
    %v1639 = vrot.slane %v1628, 4
    %v1640 = vrot.slane %v1630, 3
    %v1641 = vsel %vm834, %v1640, %v1639
    %v1643 = vsel %vm729, %v1635, %v1641
    %v1644 = vmul.f32 %v1643, %v1453
    %1646 = vrot.lane.b32.xlu0 %v1643, 64
    %v1647 = vpop.permute.xlu0 %1646
    %v1649 = vmul.f32 %v1643, %v1647
    %1651 = vrot.lane.b32.xlu0 %v1649, 32
    %v1652 = vpop.permute.xlu0 %1651
    %v1654 = vadd.f32 %v1644, %v1652
    %v1655 = vtanh.pop %v1654
    %1657 = vrot.lane.b32.xlu0 %v1655, 64
    %v1658 = vpop.permute.xlu0 %1657
    %v1660 = vmul.f32 %v1643, %v1658
    %v1661 = vld [vmem:[%s5 + $0x80] sm:$0xff]
    %v1662 = vld [vmem:[%s5 + $0x88] sm:$0xff]
    %v1663 = vld [vmem:[%s5 + $0x90] sm:$0xff]
    %v1664 = vld [vmem:[%s5 + $0x98] sm:$0xff]
    %1666 = vrot.lane.b32.xlu0 %v1660, 32
    %v1667 = vpop.permute.xlu0 %1666
    %v1668 = vsel %vm737, %v1667, 0
    %1670 = vmatprep.subr.mxu0 0.0
    %1671 = vmatpush1.msra.mxu0 %v1661
    %1672 = vmatprep.subr.mxu0 0.0
    %1673 = vmatpush1.msra.mxu0 %v1662
    %1674 = vmatprep.subr.mxu0 0.0
    %1675 = vmatpush1.msra.mxu0 %v1663
    %1676 = vmatprep.subr.mxu0 0.0
    %1677 = vmatpush1.msra.mxu0 %v1664
    %1678 = vmatprep.subr.mxu0 0.0
    %1679 = vmatpush1.msra.mxu0 0.0
    %1680 = vmatprep.subr.mxu0 0.0
    %1681 = vmatpush1.msra.mxu0 0.0
    %1682 = vmatprep.subr.mxu0 0.0
    %1683 = vmatpush1.msra.mxu0 0.0
    %1684 = vmatprep.subr.mxu0 0.0
    %1685 = vmatpush1.msra.mxu0 0.0
    %1686 = vmatprep.subr.mxu0 0.0
    %1687 = vmatpush1.msra.mxu0 0.0
    %1688 = vmatprep.subr.mxu0 0.0
    %1689 = vmatpush1.msra.mxu0 0.0
    %1690 = vmatprep.subr.mxu0 0.0
    %1691 = vmatpush1.msra.mxu0 0.0
    %1692 = vmatprep.subr.mxu0 0.0
    %1693 = vmatpush1.msra.mxu0 0.0
    %1694 = vmatprep.subr.mxu0 0.0
    %1695 = vmatpush1.msra.mxu0 0.0
    %1696 = vmatprep.subr.mxu0 0.0
    %1697 = vmatpush1.msra.mxu0 0.0
    %1698 = vmatprep.subr.mxu0 0.0
    %1699 = vmatpush1.msra.mxu0 0.0
    %1700 = vmatprep.subr.mxu0 0.0
    %1701 = vmatpush1.msra.mxu0 0.0
    %1702 = vmatprep.subr.mxu0 0.0
    %1703 = vmatpush1.msra.mxu0 0.0
    %1704 = vmatprep.subr.mxu0 0.0
    %1705 = vmatpush1.msra.mxu0 0.0
    %1706 = vmatprep.subr.mxu0 0.0
    %1707 = vmatpush1.msra.mxu0 0.0
    %1708 = vmatprep.subr.mxu0 0.0
    %1709 = vmatpush1.msra.mxu0 0.0
    %1710 = vmatprep.subr.mxu0 0.0
    %1711 = vmatpush1.msra.mxu0 0.0
    %1712 = vmatprep.subr.mxu0 0.0
    %1713 = vmatpush1.msra.mxu0 0.0
    %1714 = vmatprep.subr.mxu0 0.0
    %1715 = vmatpush1.msra.mxu0 0.0
    %1716 = vmatprep.subr.mxu0 0.0
    %1717 = vmatpush1.msra.mxu0 0.0
    %1718 = vmatprep.subr.mxu0 0.0
    %1719 = vmatpush1.msra.mxu0 0.0
    %1720 = vmatprep.subr.mxu0 0.0
    %1721 = vmatpush1.msra.mxu0 0.0
    %1722 = vmatprep.subr.mxu0 0.0
    %1723 = vmatpush1.msra.mxu0 0.0
    %1724 = vmatprep.subr.mxu0 0.0
    %1725 = vmatpush1.msra.mxu0 0.0
    %1726 = vmatprep.subr.mxu0 0.0
    %1727 = vmatpush1.msra.mxu0 0.0
    %1728 = vmatprep.subr.mxu0 0.0
    %1729 = vmatpush1.msra.mxu0 0.0
    %1730 = vmatprep.subr.mxu0 0.0
    %1731 = vmatpush1.msra.mxu0 0.0
    %1732 = vmatprep.subr.mxu0 0.0
    %1733 = vmatpush1.msra.mxu0 0.0
    %1734 = vmatprep.mubr.f32.mxu0 0.0
    %1735 = vmatmul.mubr.f32.gmra.mrb[0].mxu0 %v1668
    %v1736 = vpop.f32.mrb[0].mxu0
    %v1737 = vadd.f32 0.0, %v1736
    %v1738 = vpop.f32.mrb[0].mxu0
    %1739 = vdwg.mxu0
    %v1740 = vadd.f32 %v1539, %v1737
    %1741 = vmatprep.subr.mxu0 0.0
    %1742 = vmatpush1.msra.mxu0 %v723
    %1743 = vmatprep.subr.mxu0 0.0
    %1744 = vmatpush1.msra.mxu0 %v724
    %1745 = vmatprep.subr.mxu0 0.0
    %1746 = vmatpush1.msra.mxu0 %v725
    %1747 = vmatprep.subr.mxu0 0.0
    %1748 = vmatpush1.msra.mxu0 %v726
    %1749 = vmatprep.subr.mxu0 0.0
    %1750 = vmatpush1.msra.mxu0 0.0
    %1751 = vmatprep.subr.mxu0 0.0
    %1752 = vmatpush1.msra.mxu0 0.0
    %1753 = vmatprep.subr.mxu0 0.0
    %1754 = vmatpush1.msra.mxu0 0.0
    %1755 = vmatprep.subr.mxu0 0.0
    %1756 = vmatpush1.msra.mxu0 0.0
    %1757 = vmatprep.subr.mxu0 0.0
    %1758 = vmatpush1.msra.mxu0 0.0
    %1759 = vmatprep.subr.mxu0 0.0
    %1760 = vmatpush1.msra.mxu0 0.0
    %1761 = vmatprep.subr.mxu0 0.0
    %1762 = vmatpush1.msra.mxu0 0.0
    %1763 = vmatprep.subr.mxu0 0.0
    %1764 = vmatpush1.msra.mxu0 0.0
    %1765 = vmatprep.subr.mxu0 0.0
    %1766 = vmatpush1.msra.mxu0 0.0
    %1767 = vmatprep.subr.mxu0 0.0
    %1768 = vmatpush1.msra.mxu0 0.0
    %1769 = vmatprep.subr.mxu0 0.0
    %1770 = vmatpush1.msra.mxu0 0.0
    %1771 = vmatprep.subr.mxu0 0.0
    %1772 = vmatpush1.msra.mxu0 0.0
    %1773 = vmatprep.subr.mxu0 0.0
    %1774 = vmatpush1.msra.mxu0 0.0
    %1775 = vmatprep.subr.mxu0 0.0
    %1776 = vmatpush1.msra.mxu0 0.0
    %1777 = vmatprep.subr.mxu0 0.0
    %1778 = vmatpush1.msra.mxu0 0.0
    %1779 = vmatprep.subr.mxu0 0.0
    %1780 = vmatpush1.msra.mxu0 0.0
    %1781 = vmatprep.subr.mxu0 0.0
    %1782 = vmatpush1.msra.mxu0 0.0
    %1783 = vmatprep.subr.mxu0 0.0
    %1784 = vmatpush1.msra.mxu0 0.0
    %1785 = vmatprep.subr.mxu0 0.0
    %1786 = vmatpush1.msra.mxu0 0.0
    %1787 = vmatprep.subr.mxu0 0.0
    %1788 = vmatpush1.msra.mxu0 0.0
    %1789 = vmatprep.subr.mxu0 0.0
    %1790 = vmatpush1.msra.mxu0 0.0
    %1791 = vmatprep.subr.mxu0 0.0
    %1792 = vmatpush1.msra.mxu0 0.0
    %1793 = vmatprep.subr.mxu0 0.0
    %1794 = vmatpush1.msra.mxu0 0.0
    %1795 = vmatprep.subr.mxu0 0.0
    %1796 = vmatpush1.msra.mxu0 0.0
    %1797 = vmatprep.subr.mxu0 0.0
    %1798 = vmatpush1.msra.mxu0 0.0
    %1799 = vmatprep.subr.mxu0 0.0
    %1800 = vmatpush1.msra.mxu0 0.0
    %1801 = vmatprep.subr.mxu0 0.0
    %1802 = vmatpush1.msra.mxu0 0.0
    %1803 = vmatprep.subr.mxu0 0.0
    %1804 = vmatpush1.msra.mxu0 0.0
    %1805 = vmatprep.mubr.f32.mxu0 0.0
    %1806 = vmatmul.mubr.f32.gmra.mrb[0].mxu0 %v1668
    %v1807 = vpop.f32.mrb[0].mxu0
    %v1808 = vadd.f32 0.0, %v1807
    %v1809 = vpop.f32.mrb[0].mxu0
    %1810 = vdwg.mxu0
    %v1812 = vrot.slane %v1808, 3
    %v1813 = vrot.slane %v1808, 4
    %v1816 = vadd.f32 %v715, %v1812
    %v1817 = vadd.f32 %v720, %v1813
    %v1818 = vtanh.pop %v1816
    %v1819 = vtanh.pop %v1817
    %v1820 = vxor.u32 %v1816, 2147483648
    %v1821 = vxor.u32 %v1817, 2147483648
    %v1822 = vmul.f32 %v1820, 1.442695
    %v1823 = vpow.pop %v1822
    %v1824 = vmul.f32 %v1821, 1.442695
    %v1825 = vpow.pop %v1824
    %v1826 = vadd.f32 %v1823, 1.0
    %v1827 = vadd.f32 %v1825, 1.0
    %v1828 = vrcp.pop %v1826
    %v1829 = vmul.f32 1.0, %v1828
    %v1830 = vrcp.pop %v1827
    %v1831 = vmul.f32 1.0, %v1830
    %v1834 = vrot.slane %v1818, 5
    %v1835 = vrot.slane %v1819, 4
    %v1836 = vsel %vm834, %v1835, %v1834
    %v1840 = vrot.slane %v1829, 5
    %v1841 = vrot.slane %v1831, 4
    %v1842 = vsel %vm834, %v1841, %v1840
    %v1844 = vsel %vm729, %v1836, %v1842
    %v1845 = vmul.f32 %v1844, %v1654
    %1847 = vrot.lane.b32.xlu0 %v1844, 64
    %v1848 = vpop.permute.xlu0 %1847
    %v1850 = vmul.f32 %v1844, %v1848
    %1852 = vrot.lane.b32.xlu0 %v1850, 32
    %v1853 = vpop.permute.xlu0 %1852
    %v1855 = vadd.f32 %v1845, %v1853
    %v1856 = vtanh.pop %v1855
    %1858 = vrot.lane.b32.xlu0 %v1856, 64
    %v1859 = vpop.permute.xlu0 %1858
    %v1861 = vmul.f32 %v1844, %v1859
    %v1862 = vld [vmem:[%s5 + $0xa0] sm:$0xff]
    %v1863 = vld [vmem:[%s5 + $0xa8] sm:$0xff]
    %v1864 = vld [vmem:[%s5 + $0xb0] sm:$0xff]
    %v1865 = vld [vmem:[%s5 + $0xb8] sm:$0xff]
    %1867 = vrot.lane.b32.xlu0 %v1861, 32
    %v1868 = vpop.permute.xlu0 %1867
    %v1869 = vsel %vm737, %v1868, 0
    %1871 = vmatprep.subr.mxu0 0.0
    %1872 = vmatpush1.msra.mxu0 %v1862
    %1873 = vmatprep.subr.mxu0 0.0
    %1874 = vmatpush1.msra.mxu0 %v1863
    %1875 = vmatprep.subr.mxu0 0.0
    %1876 = vmatpush1.msra.mxu0 %v1864
    %1877 = vmatprep.subr.mxu0 0.0
    %1878 = vmatpush1.msra.mxu0 %v1865
    %1879 = vmatprep.subr.mxu0 0.0
    %1880 = vmatpush1.msra.mxu0 0.0
    %1881 = vmatprep.subr.mxu0 0.0
    %1882 = vmatpush1.msra.mxu0 0.0
    %1883 = vmatprep.subr.mxu0 0.0
    %1884 = vmatpush1.msra.mxu0 0.0
    %1885 = vmatprep.subr.mxu0 0.0
    %1886 = vmatpush1.msra.mxu0 0.0
    %1887 = vmatprep.subr.mxu0 0.0
    %1888 = vmatpush1.msra.mxu0 0.0
    %1889 = vmatprep.subr.mxu0 0.0
    %1890 = vmatpush1.msra.mxu0 0.0
    %1891 = vmatprep.subr.mxu0 0.0
    %1892 = vmatpush1.msra.mxu0 0.0
    %1893 = vmatprep.subr.mxu0 0.0
    %1894 = vmatpush1.msra.mxu0 0.0
    %1895 = vmatprep.subr.mxu0 0.0
    %1896 = vmatpush1.msra.mxu0 0.0
    %1897 = vmatprep.subr.mxu0 0.0
    %1898 = vmatpush1.msra.mxu0 0.0
    %1899 = vmatprep.subr.mxu0 0.0
    %1900 = vmatpush1.msra.mxu0 0.0
    %1901 = vmatprep.subr.mxu0 0.0
    %1902 = vmatpush1.msra.mxu0 0.0
    %1903 = vmatprep.subr.mxu0 0.0
    %1904 = vmatpush1.msra.mxu0 0.0
    %1905 = vmatprep.subr.mxu0 0.0
    %1906 = vmatpush1.msra.mxu0 0.0
    %1907 = vmatprep.subr.mxu0 0.0
    %1908 = vmatpush1.msra.mxu0 0.0
    %1909 = vmatprep.subr.mxu0 0.0
    %1910 = vmatpush1.msra.mxu0 0.0
    %1911 = vmatprep.subr.mxu0 0.0
    %1912 = vmatpush1.msra.mxu0 0.0
    %1913 = vmatprep.subr.mxu0 0.0
    %1914 = vmatpush1.msra.mxu0 0.0
    %1915 = vmatprep.subr.mxu0 0.0
    %1916 = vmatpush1.msra.mxu0 0.0
    %1917 = vmatprep.subr.mxu0 0.0
    %1918 = vmatpush1.msra.mxu0 0.0
    %1919 = vmatprep.subr.mxu0 0.0
    %1920 = vmatpush1.msra.mxu0 0.0
    %1921 = vmatprep.subr.mxu0 0.0
    %1922 = vmatpush1.msra.mxu0 0.0
    %1923 = vmatprep.subr.mxu0 0.0
    %1924 = vmatpush1.msra.mxu0 0.0
    %1925 = vmatprep.subr.mxu0 0.0
    %1926 = vmatpush1.msra.mxu0 0.0
    %1927 = vmatprep.subr.mxu0 0.0
    %1928 = vmatpush1.msra.mxu0 0.0
    %1929 = vmatprep.subr.mxu0 0.0
    %1930 = vmatpush1.msra.mxu0 0.0
    %1931 = vmatprep.subr.mxu0 0.0
    %1932 = vmatpush1.msra.mxu0 0.0
    %1933 = vmatprep.subr.mxu0 0.0
    %1934 = vmatpush1.msra.mxu0 0.0
    %1935 = vmatprep.mubr.f32.mxu0 0.0
    %1936 = vmatmul.mubr.f32.gmra.mrb[0].mxu0 %v1869
    %v1937 = vpop.f32.mrb[0].mxu0
    %v1938 = vadd.f32 0.0, %v1937
    %v1939 = vpop.f32.mrb[0].mxu0
    %1940 = vdwg.mxu0
    %v1941 = vadd.f32 %v1740, %v1938
    %1942 = vmatprep.subr.mxu0 0.0
    %1943 = vmatpush1.msra.mxu0 %v723
    %1944 = vmatprep.subr.mxu0 0.0
    %1945 = vmatpush1.msra.mxu0 %v724
    %1946 = vmatprep.subr.mxu0 0.0
    %1947 = vmatpush1.msra.mxu0 %v725
    %1948 = vmatprep.subr.mxu0 0.0
    %1949 = vmatpush1.msra.mxu0 %v726
    %1950 = vmatprep.subr.mxu0 0.0
    %1951 = vmatpush1.msra.mxu0 0.0
    %1952 = vmatprep.subr.mxu0 0.0
    %1953 = vmatpush1.msra.mxu0 0.0
    %1954 = vmatprep.subr.mxu0 0.0
    %1955 = vmatpush1.msra.mxu0 0.0
    %1956 = vmatprep.subr.mxu0 0.0
    %1957 = vmatpush1.msra.mxu0 0.0
    %1958 = vmatprep.subr.mxu0 0.0
    %1959 = vmatpush1.msra.mxu0 0.0
    %1960 = vmatprep.subr.mxu0 0.0
    %1961 = vmatpush1.msra.mxu0 0.0
    %1962 = vmatprep.subr.mxu0 0.0
    %1963 = vmatpush1.msra.mxu0 0.0
    %1964 = vmatprep.subr.mxu0 0.0
    %1965 = vmatpush1.msra.mxu0 0.0
    %1966 = vmatprep.subr.mxu0 0.0
    %1967 = vmatpush1.msra.mxu0 0.0
    %1968 = vmatprep.subr.mxu0 0.0
    %1969 = vmatpush1.msra.mxu0 0.0
    %1970 = vmatprep.subr.mxu0 0.0
    %1971 = vmatpush1.msra.mxu0 0.0
    %1972 = vmatprep.subr.mxu0 0.0
    %1973 = vmatpush1.msra.mxu0 0.0
    %1974 = vmatprep.subr.mxu0 0.0
    %1975 = vmatpush1.msra.mxu0 0.0
    %1976 = vmatprep.subr.mxu0 0.0
    %1977 = vmatpush1.msra.mxu0 0.0
    %1978 = vmatprep.subr.mxu0 0.0
    %1979 = vmatpush1.msra.mxu0 0.0
    %1980 = vmatprep.subr.mxu0 0.0
    %1981 = vmatpush1.msra.mxu0 0.0
    %1982 = vmatprep.subr.mxu0 0.0
    %1983 = vmatpush1.msra.mxu0 0.0
    %1984 = vmatprep.subr.mxu0 0.0
    %1985 = vmatpush1.msra.mxu0 0.0
    %1986 = vmatprep.subr.mxu0 0.0
    %1987 = vmatpush1.msra.mxu0 0.0
    %1988 = vmatprep.subr.mxu0 0.0
    %1989 = vmatpush1.msra.mxu0 0.0
    %1990 = vmatprep.subr.mxu0 0.0
    %1991 = vmatpush1.msra.mxu0 0.0
    %1992 = vmatprep.subr.mxu0 0.0
    %1993 = vmatpush1.msra.mxu0 0.0
    %1994 = vmatprep.subr.mxu0 0.0
    %1995 = vmatpush1.msra.mxu0 0.0
    %1996 = vmatprep.subr.mxu0 0.0
    %1997 = vmatpush1.msra.mxu0 0.0
    %1998 = vmatprep.subr.mxu0 0.0
    %1999 = vmatpush1.msra.mxu0 0.0
    %2000 = vmatprep.subr.mxu0 0.0
    %2001 = vmatpush1.msra.mxu0 0.0
    %2002 = vmatprep.subr.mxu0 0.0
    %2003 = vmatpush1.msra.mxu0 0.0
    %2004 = vmatprep.subr.mxu0 0.0
    %2005 = vmatpush1.msra.mxu0 0.0
    %2006 = vmatprep.mubr.f32.mxu0 0.0
    %2007 = vmatmul.mubr.f32.gmra.mrb[0].mxu0 %v1869
    %v2008 = vpop.f32.mrb[0].mxu0
    %v2009 = vadd.f32 0.0, %v2008
    %v2010 = vpop.f32.mrb[0].mxu0
    %2011 = vdwg.mxu0
    %v2013 = vrot.slane %v2009, 2
    %v2014 = vrot.slane %v2009, 3
    %v2017 = vadd.f32 %v715, %v2013
    %v2018 = vadd.f32 %v720, %v2014
    %v2019 = vtanh.pop %v2017
    %v2020 = vtanh.pop %v2018
    %v2021 = vxor.u32 %v2017, 2147483648
    %v2022 = vxor.u32 %v2018, 2147483648
    %v2023 = vmul.f32 %v2021, 1.442695
    %v2024 = vpow.pop %v2023
    %v2025 = vmul.f32 %v2022, 1.442695
    %v2026 = vpow.pop %v2025
    %v2027 = vadd.f32 %v2024, 1.0
    %v2028 = vadd.f32 %v2026, 1.0
    %v2029 = vrcp.pop %v2027
    %v2030 = vmul.f32 1.0, %v2029
    %v2031 = vrcp.pop %v2028
    %v2032 = vmul.f32 1.0, %v2031
    %v2035 = vrot.slane %v2019, 6
    %v2036 = vrot.slane %v2020, 5
    %v2037 = vsel %vm834, %v2036, %v2035
    %v2041 = vrot.slane %v2030, 6
    %v2042 = vrot.slane %v2032, 5
    %v2043 = vsel %vm834, %v2042, %v2041
    %v2045 = vsel %vm729, %v2037, %v2043
    %v2046 = vmul.f32 %v2045, %v1855
    %2048 = vrot.lane.b32.xlu0 %v2045, 64
    %v2049 = vpop.permute.xlu0 %2048
    %v2051 = vmul.f32 %v2045, %v2049
    %2053 = vrot.lane.b32.xlu0 %v2051, 32
    %v2054 = vpop.permute.xlu0 %2053
    %v2056 = vadd.f32 %v2046, %v2054
    %v2057 = vtanh.pop %v2056
    %2059 = vrot.lane.b32.xlu0 %v2057, 64
    %v2060 = vpop.permute.xlu0 %2059
    %v2062 = vmul.f32 %v2045, %v2060
    %v2063 = vld [vmem:[%s5 + $0xc0] sm:$0xff]
    %v2064 = vld [vmem:[%s5 + $0xc8] sm:$0xff]
    %v2065 = vld [vmem:[%s5 + $0xd0] sm:$0xff]
    %v2066 = vld [vmem:[%s5 + $0xd8] sm:$0xff]
    %2068 = vrot.lane.b32.xlu0 %v2062, 32
    %v2069 = vpop.permute.xlu0 %2068
    %v2070 = vsel %vm737, %v2069, 0
    %2072 = vmatprep.subr.mxu0 0.0
    %2073 = vmatpush1.msra.mxu0 %v2063
    %2074 = vmatprep.subr.mxu0 0.0
    %2075 = vmatpush1.msra.mxu0 %v2064
    %2076 = vmatprep.subr.mxu0 0.0
    %2077 = vmatpush1.msra.mxu0 %v2065
    %2078 = vmatprep.subr.mxu0 0.0
    %2079 = vmatpush1.msra.mxu0 %v2066
    %2080 = vmatprep.subr.mxu0 0.0
    %2081 = vmatpush1.msra.mxu0 0.0
    %2082 = vmatprep.subr.mxu0 0.0
    %2083 = vmatpush1.msra.mxu0 0.0
    %2084 = vmatprep.subr.mxu0 0.0
    %2085 = vmatpush1.msra.mxu0 0.0
    %2086 = vmatprep.subr.mxu0 0.0
    %2087 = vmatpush1.msra.mxu0 0.0
    %2088 = vmatprep.subr.mxu0 0.0
    %2089 = vmatpush1.msra.mxu0 0.0
    %2090 = vmatprep.subr.mxu0 0.0
    %2091 = vmatpush1.msra.mxu0 0.0
    %2092 = vmatprep.subr.mxu0 0.0
    %2093 = vmatpush1.msra.mxu0 0.0
    %2094 = vmatprep.subr.mxu0 0.0
    %2095 = vmatpush1.msra.mxu0 0.0
    %2096 = vmatprep.subr.mxu0 0.0
    %2097 = vmatpush1.msra.mxu0 0.0
    %2098 = vmatprep.subr.mxu0 0.0
    %2099 = vmatpush1.msra.mxu0 0.0
    %2100 = vmatprep.subr.mxu0 0.0
    %2101 = vmatpush1.msra.mxu0 0.0
    %2102 = vmatprep.subr.mxu0 0.0
    %2103 = vmatpush1.msra.mxu0 0.0
    %2104 = vmatprep.subr.mxu0 0.0
    %2105 = vmatpush1.msra.mxu0 0.0
    %2106 = vmatprep.subr.mxu0 0.0
    %2107 = vmatpush1.msra.mxu0 0.0
    %2108 = vmatprep.subr.mxu0 0.0
    %2109 = vmatpush1.msra.mxu0 0.0
    %2110 = vmatprep.subr.mxu0 0.0
    %2111 = vmatpush1.msra.mxu0 0.0
    %2112 = vmatprep.subr.mxu0 0.0
    %2113 = vmatpush1.msra.mxu0 0.0
    %2114 = vmatprep.subr.mxu0 0.0
    %2115 = vmatpush1.msra.mxu0 0.0
    %2116 = vmatprep.subr.mxu0 0.0
    %2117 = vmatpush1.msra.mxu0 0.0
    %2118 = vmatprep.subr.mxu0 0.0
    %2119 = vmatpush1.msra.mxu0 0.0
    %2120 = vmatprep.subr.mxu0 0.0
    %2121 = vmatpush1.msra.mxu0 0.0
    %2122 = vmatprep.subr.mxu0 0.0
    %2123 = vmatpush1.msra.mxu0 0.0
    %2124 = vmatprep.subr.mxu0 0.0
    %2125 = vmatpush1.msra.mxu0 0.0
    %2126 = vmatprep.subr.mxu0 0.0
    %2127 = vmatpush1.msra.mxu0 0.0
    %2128 = vmatprep.subr.mxu0 0.0
    %2129 = vmatpush1.msra.mxu0 0.0
    %2130 = vmatprep.subr.mxu0 0.0
    %2131 = vmatpush1.msra.mxu0 0.0
    %2132 = vmatprep.subr.mxu0 0.0
    %2133 = vmatpush1.msra.mxu0 0.0
    %2134 = vmatprep.subr.mxu0 0.0
    %2135 = vmatpush1.msra.mxu0 0.0
    %2136 = vmatprep.mubr.f32.mxu0 0.0
    %2137 = vmatmul.mubr.f32.gmra.mrb[0].mxu0 %v2070
    %v2138 = vpop.f32.mrb[0].mxu0
    %v2139 = vadd.f32 0.0, %v2138
    %v2140 = vpop.f32.mrb[0].mxu0
    %2141 = vdwg.mxu0
    %v2142 = vadd.f32 %v1941, %v2139
    %2143 = vmatprep.subr.mxu0 0.0
    %2144 = vmatpush1.msra.mxu0 %v723
    %2145 = vmatprep.subr.mxu0 0.0
    %2146 = vmatpush1.msra.mxu0 %v724
    %2147 = vmatprep.subr.mxu0 0.0
    %2148 = vmatpush1.msra.mxu0 %v725
    %2149 = vmatprep.subr.mxu0 0.0
    %2150 = vmatpush1.msra.mxu0 %v726
    %2151 = vmatprep.subr.mxu0 0.0
    %2152 = vmatpush1.msra.mxu0 0.0
    %2153 = vmatprep.subr.mxu0 0.0
    %2154 = vmatpush1.msra.mxu0 0.0
    %2155 = vmatprep.subr.mxu0 0.0
    %2156 = vmatpush1.msra.mxu0 0.0
    %2157 = vmatprep.subr.mxu0 0.0
    %2158 = vmatpush1.msra.mxu0 0.0
    %2159 = vmatprep.subr.mxu0 0.0
    %2160 = vmatpush1.msra.mxu0 0.0
    %2161 = vmatprep.subr.mxu0 0.0
    %2162 = vmatpush1.msra.mxu0 0.0
    %2163 = vmatprep.subr.mxu0 0.0
    %2164 = vmatpush1.msra.mxu0 0.0
    %2165 = vmatprep.subr.mxu0 0.0
    %2166 = vmatpush1.msra.mxu0 0.0
    %2167 = vmatprep.subr.mxu0 0.0
    %2168 = vmatpush1.msra.mxu0 0.0
    %2169 = vmatprep.subr.mxu0 0.0
    %2170 = vmatpush1.msra.mxu0 0.0
    %2171 = vmatprep.subr.mxu0 0.0
    %2172 = vmatpush1.msra.mxu0 0.0
    %2173 = vmatprep.subr.mxu0 0.0
    %2174 = vmatpush1.msra.mxu0 0.0
    %2175 = vmatprep.subr.mxu0 0.0
    %2176 = vmatpush1.msra.mxu0 0.0
    %2177 = vmatprep.subr.mxu0 0.0
    %2178 = vmatpush1.msra.mxu0 0.0
    %2179 = vmatprep.subr.mxu0 0.0
    %2180 = vmatpush1.msra.mxu0 0.0
    %2181 = vmatprep.subr.mxu0 0.0
    %2182 = vmatpush1.msra.mxu0 0.0
    %2183 = vmatprep.subr.mxu0 0.0
    %2184 = vmatpush1.msra.mxu0 0.0
    %2185 = vmatprep.subr.mxu0 0.0
    %2186 = vmatpush1.msra.mxu0 0.0
    %2187 = vmatprep.subr.mxu0 0.0
    %2188 = vmatpush1.msra.mxu0 0.0
    %2189 = vmatprep.subr.mxu0 0.0
    %2190 = vmatpush1.msra.mxu0 0.0
    %2191 = vmatprep.subr.mxu0 0.0
    %2192 = vmatpush1.msra.mxu0 0.0
    %2193 = vmatprep.subr.mxu0 0.0
    %2194 = vmatpush1.msra.mxu0 0.0
    %2195 = vmatprep.subr.mxu0 0.0
    %2196 = vmatpush1.msra.mxu0 0.0
    %2197 = vmatprep.subr.mxu0 0.0
    %2198 = vmatpush1.msra.mxu0 0.0
    %2199 = vmatprep.subr.mxu0 0.0
    %2200 = vmatpush1.msra.mxu0 0.0
    %2201 = vmatprep.subr.mxu0 0.0
    %2202 = vmatpush1.msra.mxu0 0.0
    %2203 = vmatprep.subr.mxu0 0.0
    %2204 = vmatpush1.msra.mxu0 0.0
    %2205 = vmatprep.subr.mxu0 0.0
    %2206 = vmatpush1.msra.mxu0 0.0
    %2207 = vmatprep.mubr.f32.mxu0 0.0
    %2208 = vmatmul.mubr.f32.gmra.mrb[0].mxu0 %v2070
    %v2209 = vpop.f32.mrb[0].mxu0
    %v2210 = vadd.f32 0.0, %v2209
    %v2211 = vpop.f32.mrb[0].mxu0
    %2212 = vdwg.mxu0
    %v2214 = vrot.slane %v2210, 1
    %v2215 = vrot.slane %v2210, 2
    %v2218 = vadd.f32 %v715, %v2214
    %v2219 = vadd.f32 %v720, %v2215
    %v2220 = vtanh.pop %v2218
    %v2221 = vtanh.pop %v2219
    %v2222 = vxor.u32 %v2218, 2147483648
    %v2223 = vxor.u32 %v2219, 2147483648
    %v2224 = vmul.f32 %v2222, 1.442695
    %v2225 = vpow.pop %v2224
    %v2226 = vmul.f32 %v2223, 1.442695
    %v2227 = vpow.pop %v2226
    %v2228 = vadd.f32 %v2225, 1.0
    %v2229 = vadd.f32 %v2227, 1.0
    %v2230 = vrcp.pop %v2228
    %v2231 = vmul.f32 1.0, %v2230
    %v2232 = vrcp.pop %v2229
    %v2233 = vmul.f32 1.0, %v2232
    %v2236 = vrot.slane %v2220, 7
    %v2237 = vrot.slane %v2221, 6
    %v2238 = vsel %vm834, %v2237, %v2236
    %v2242 = vrot.slane %v2231, 7
    %v2243 = vrot.slane %v2233, 6
    %v2244 = vsel %vm834, %v2243, %v2242
    %v2246 = vsel %vm729, %v2238, %v2244
    %v2247 = vmul.f32 %v2246, %v2056
    %2249 = vrot.lane.b32.xlu0 %v2246, 64
    %v2250 = vpop.permute.xlu0 %2249
    %v2252 = vmul.f32 %v2246, %v2250
    %2254 = vrot.lane.b32.xlu0 %v2252, 32
    %v2255 = vpop.permute.xlu0 %2254
    %v2257 = vadd.f32 %v2247, %v2255
    %v2258 = vtanh.pop %v2257
    %2260 = vrot.lane.b32.xlu0 %v2258, 64
    %v2261 = vpop.permute.xlu0 %2260
    %v2263 = vmul.f32 %v2246, %v2261
    %v2264 = vld [vmem:[%s5 + $0xe0] sm:$0xff]
    %v2265 = vld [vmem:[%s5 + $0xe8] sm:$0xff]
    %v2266 = vld [vmem:[%s5 + $0xf0] sm:$0xff]
    %v2267 = vld [vmem:[%s5 + $0xf8] sm:$0xff]
    %2269 = vrot.lane.b32.xlu0 %v2263, 32
    %v2270 = vpop.permute.xlu0 %2269
    %v2271 = vsel %vm737, %v2270, 0
    %2273 = vmatprep.subr.mxu0 0.0
    %2274 = vmatpush1.msra.mxu0 %v2264
    %2275 = vmatprep.subr.mxu0 0.0
    %2276 = vmatpush1.msra.mxu0 %v2265
    %2277 = vmatprep.subr.mxu0 0.0
    %2278 = vmatpush1.msra.mxu0 %v2266
    %2279 = vmatprep.subr.mxu0 0.0
    %2280 = vmatpush1.msra.mxu0 %v2267
    %2281 = vmatprep.subr.mxu0 0.0
    %2282 = vmatpush1.msra.mxu0 0.0
    %2283 = vmatprep.subr.mxu0 0.0
    %2284 = vmatpush1.msra.mxu0 0.0
    %2285 = vmatprep.subr.mxu0 0.0
    %2286 = vmatpush1.msra.mxu0 0.0
    %2287 = vmatprep.subr.mxu0 0.0
    %2288 = vmatpush1.msra.mxu0 0.0
    %2289 = vmatprep.subr.mxu0 0.0
    %2290 = vmatpush1.msra.mxu0 0.0
    %2291 = vmatprep.subr.mxu0 0.0
    %2292 = vmatpush1.msra.mxu0 0.0
    %2293 = vmatprep.subr.mxu0 0.0
    %2294 = vmatpush1.msra.mxu0 0.0
    %2295 = vmatprep.subr.mxu0 0.0
    %2296 = vmatpush1.msra.mxu0 0.0
    %2297 = vmatprep.subr.mxu0 0.0
    %2298 = vmatpush1.msra.mxu0 0.0
    %2299 = vmatprep.subr.mxu0 0.0
    %2300 = vmatpush1.msra.mxu0 0.0
    %2301 = vmatprep.subr.mxu0 0.0
    %2302 = vmatpush1.msra.mxu0 0.0
    %2303 = vmatprep.subr.mxu0 0.0
    %2304 = vmatpush1.msra.mxu0 0.0
    %2305 = vmatprep.subr.mxu0 0.0
    %2306 = vmatpush1.msra.mxu0 0.0
    %2307 = vmatprep.subr.mxu0 0.0
    %2308 = vmatpush1.msra.mxu0 0.0
    %2309 = vmatprep.subr.mxu0 0.0
    %2310 = vmatpush1.msra.mxu0 0.0
    %2311 = vmatprep.subr.mxu0 0.0
    %2312 = vmatpush1.msra.mxu0 0.0
    %2313 = vmatprep.subr.mxu0 0.0
    %2314 = vmatpush1.msra.mxu0 0.0
    %2315 = vmatprep.subr.mxu0 0.0
    %2316 = vmatpush1.msra.mxu0 0.0
    %2317 = vmatprep.subr.mxu0 0.0
    %2318 = vmatpush1.msra.mxu0 0.0
    %2319 = vmatprep.subr.mxu0 0.0
    %2320 = vmatpush1.msra.mxu0 0.0
    %2321 = vmatprep.subr.mxu0 0.0
    %2322 = vmatpush1.msra.mxu0 0.0
    %2323 = vmatprep.subr.mxu0 0.0
    %2324 = vmatpush1.msra.mxu0 0.0
    %2325 = vmatprep.subr.mxu0 0.0
    %2326 = vmatpush1.msra.mxu0 0.0
    %2327 = vmatprep.subr.mxu0 0.0
    %2328 = vmatpush1.msra.mxu0 0.0
    %2329 = vmatprep.subr.mxu0 0.0
    %2330 = vmatpush1.msra.mxu0 0.0
    %2331 = vmatprep.subr.mxu0 0.0
    %2332 = vmatpush1.msra.mxu0 0.0
    %2333 = vmatprep.subr.mxu0 0.0
    %2334 = vmatpush1.msra.mxu0 0.0
    %2335 = vmatprep.subr.mxu0 0.0
    %2336 = vmatpush1.msra.mxu0 0.0
    %2337 = vmatprep.mubr.f32.mxu0 0.0
    %2338 = vmatmul.mubr.f32.gmra.mrb[0].mxu0 %v2271
    %v2339 = vpop.f32.mrb[0].mxu0
    %v2340 = vadd.f32 0.0, %v2339
    %v2341 = vpop.f32.mrb[0].mxu0
    %2342 = vdwg.mxu0
    %v2343 = vadd.f32 %v2142, %v2340
    %v2344 = vld [vmem:[%s7] sm:$0xff]
    %v2345 = vld [vmem:[%s8] sm:$0x1]
    %v2347 = vlaneseq
    %v2348 = vshrl.u32 %v2347, 7
    %v2349 = vsub.s32 0, %v2348
    %v2350 = vrot.slane %v2345, %v2349
    %vm2352 = vcmask 64512
    %v2354 = vsel %vm2352, %v2343, 0
    %2356 = vmatprep.subr.mxu0 0.0
    %2357 = vmatpush1.msra.mxu0 %v2344
    %2358 = vmatprep.subr.mxu0 0.0
    %2359 = vmatpush1.msra.mxu0 0.0
    %2360 = vmatprep.subr.mxu0 0.0
    %2361 = vmatpush1.msra.mxu0 0.0
    %2362 = vmatprep.subr.mxu0 0.0
    %2363 = vmatpush1.msra.mxu0 0.0
    %2364 = vmatprep.subr.mxu0 0.0
    %2365 = vmatpush1.msra.mxu0 0.0
    %2366 = vmatprep.subr.mxu0 0.0
    %2367 = vmatpush1.msra.mxu0 0.0
    %2368 = vmatprep.subr.mxu0 0.0
    %2369 = vmatpush1.msra.mxu0 0.0
    %2370 = vmatprep.subr.mxu0 0.0
    %2371 = vmatpush1.msra.mxu0 0.0
    %2372 = vmatprep.subr.mxu0 0.0
    %2373 = vmatpush1.msra.mxu0 0.0
    %2374 = vmatprep.subr.mxu0 0.0
    %2375 = vmatpush1.msra.mxu0 0.0
    %2376 = vmatprep.subr.mxu0 0.0
    %2377 = vmatpush1.msra.mxu0 0.0
    %2378 = vmatprep.subr.mxu0 0.0
    %2379 = vmatpush1.msra.mxu0 0.0
    %2380 = vmatprep.subr.mxu0 0.0
    %2381 = vmatpush1.msra.mxu0 0.0
    %2382 = vmatprep.subr.mxu0 0.0
    %2383 = vmatpush1.msra.mxu0 0.0
    %2384 = vmatprep.subr.mxu0 0.0
    %2385 = vmatpush1.msra.mxu0 0.0
    %2386 = vmatprep.subr.mxu0 0.0
    %2387 = vmatpush1.msra.mxu0 0.0
    %2388 = vmatprep.subr.mxu0 0.0
    %2389 = vmatpush1.msra.mxu0 0.0
    %2390 = vmatprep.subr.mxu0 0.0
    %2391 = vmatpush1.msra.mxu0 0.0
    %2392 = vmatprep.subr.mxu0 0.0
    %2393 = vmatpush1.msra.mxu0 0.0
    %2394 = vmatprep.subr.mxu0 0.0
    %2395 = vmatpush1.msra.mxu0 0.0
    %2396 = vmatprep.subr.mxu0 0.0
    %2397 = vmatpush1.msra.mxu0 0.0
    %2398 = vmatprep.subr.mxu0 0.0
    %2399 = vmatpush1.msra.mxu0 0.0
    %2400 = vmatprep.subr.mxu0 0.0
    %2401 = vmatpush1.msra.mxu0 0.0
    %2402 = vmatprep.subr.mxu0 0.0
    %2403 = vmatpush1.msra.mxu0 0.0
    %2404 = vmatprep.subr.mxu0 0.0
    %2405 = vmatpush1.msra.mxu0 0.0
    %2406 = vmatprep.subr.mxu0 0.0
    %2407 = vmatpush1.msra.mxu0 0.0
    %2408 = vmatprep.subr.mxu0 0.0
    %2409 = vmatpush1.msra.mxu0 0.0
    %2410 = vmatprep.subr.mxu0 0.0
    %2411 = vmatpush1.msra.mxu0 0.0
    %2412 = vmatprep.subr.mxu0 0.0
    %2413 = vmatpush1.msra.mxu0 0.0
    %2414 = vmatprep.subr.mxu0 0.0
    %2415 = vmatpush1.msra.mxu0 0.0
    %2416 = vmatprep.subr.mxu0 0.0
    %2417 = vmatpush1.msra.mxu0 0.0
    %2418 = vmatprep.subr.mxu0 0.0
    %2419 = vmatpush1.msra.mxu0 0.0
    %2420 = vmatprep.mubr.f32.mxu0 0.0
    %2421 = vmatmul.mubr.f32.gmra.mrb[0].mxu0 %v2354
    %v2422 = vpop.f32.mrb[0].mxu0
    %v2423 = vadd.f32 %v2350, %v2422
    %v2424 = vpop.f32.mrb[0].mxu0
    %2425 = vdwg.mxu0
    %vm2426 = vcmask 9216
    %2427 = vst.msk [vmem:[#allocation2] sm:$0x3] %vm2426, %v2423
    // Predicated region
    $region38: #{simple_model_forward.1} parent=1 // pred_check
      _
    $region39: #{simple_model_forward.1} parent=1 // pred_check_branch
      %2429 = sbr.rel (0) target = $region41
    $region40: #{simple_model_forward.1} parent=1 // pred_region
      %s2431 = ssub.s32 32, 32
      %2432 = vsyncadd [#allocation3], %s2431
      %s2434 = sshll.u32 [#allocation2], 4
      %s2435 = int_to_ptr.vmem [resolvable:$true] %s2434
      %2437 = dma.vmem_to_hbm [thread:$0]  %s2435, 32, %s9, [#allocation3]
    $region41: #{simple_model_forward.1} parent=1 // pred_fallthru
      _
    // Predicated region
    $region42: #{simple_model_forward.1} parent=1 // pred_check
      _
    $region43: #{simple_model_forward.1} parent=1 // pred_check_branch
      %2439 = sbr.rel (0) target = $region45
    $region44: #{simple_model_forward.1} parent=1 // pred_region
      %2440 = dma.done [#allocation3], 32
    $region45: #{simple_model_forward.1} parent=1 // pred_fallthru
      _
    %2441 = vsyncpa [#allocation3], 1

</llo_original>
